<compile_context>
chip_gen: v6e
topology: v6e:2x2x1
jax: 0.10.0
libtpu: 0.0.40
codegen_flags: <defaults>
</compile_context>

<pallas_src>
import jax
import jax.numpy as jnp
from jax.experimental import pallas as pl
from jax.experimental.pallas import tpu as pltpu

LANE = 128        # vreg lane width
SUBLANE = 8       # f32 sublane count
MAX_TB = 512      # max batch-tile rows (~85% of HBM roofline vs ~29% at 128)


def _round_up(x: int, m: int) -> int:
    return (x + m - 1) // m * m


def _pad2d(a, rows, cols):
    """Zero-pad a 2-D array up to (rows, cols); no-op (no extra HBM pass) if aligned."""
    pr, pc = rows - a.shape[0], cols - a.shape[1]
    if pr == 0 and pc == 0:
        return a
    return jnp.pad(a, ((0, pr), (0, pc)))


def _vmem_bytes(tb, tk, h_p, d_out_p, mm_bytes):
    """Estimated VMEM working set of one pipelined grid step."""
    x_stream = 2 * tb * tk * mm_bytes        # double-buffered activation K-slabs
    w1_stream = 2 * tk * h_p * mm_bytes      # double-buffered w1 K-slabs
    w2_res = h_p * d_out_p * mm_bytes        # resident (single buffer)
    bias = (h_p + d_out_p) * 4
    acc = tb * h_p * 4                       # f32 accumulator scratch
    out_stream = 2 * tb * d_out_p * 4        # double-buffered f32 output tiles
    return x_stream + w1_stream + w2_res + bias + acc + out_stream


def _vmem_budget():
    cap = 64 * 1024 * 1024                   # conservative default (v7x per-TC)
    try:
        cap = int(pltpu.get_tpu_info().vmem_capacity_bytes)
    except Exception:
        pass
    return int(cap * 0.7)                    # headroom for compiler scratch


def expert_mlp_kernel(x_ref, w1_ref, b1_ref, w2_ref, b2_ref, o_ref, acc_ref):
    # grid = (batch_tiles, k_tiles); K (reduction over D_in) is the last axis.
    # x_ref : (TB, TK)            activation K-slab (bf16 or f32)
    # w1_ref: (TK, H_pad)         first Linear weight K-slab
    # b1_ref: (1, H_pad)          f32
    # w2_ref: (H_pad, D_out_pad)  resident second Linear weight
    # b2_ref: (1, D_out_pad)      f32
    # o_ref : (TB, D_out_pad)     lane-dense f32 output tile
    # acc_ref: (TB, H_pad)        f32 accumulator scratch
    k = pl.program_id(1)

    @pl.when(k == 0)
    def _init():
        acc_ref[...] = jnp.zeros_like(acc_ref)

    # MXU pass, accumulated in f32.
    acc_ref[...] += jnp.dot(x_ref[...], w1_ref[...],
                            preferred_element_type=jnp.float32)

    @pl.when(k == pl.num_programs(1) - 1)
    def _finalize():
        h = jnp.tanh(acc_ref[...] + b1_ref[...])                 # f32 activations
        y = jnp.dot(h.astype(w2_ref.dtype), w2_ref[...],
                    preferred_element_type=jnp.float32) + b2_ref[...]
        # TODO(synk): if a bundle dump ever shows this VALU-bound, switch to
        # pl.reciprocal(1 + exp(-y), approx=True) to push the divide to the EUP.
        o_ref[...] = jax.nn.sigmoid(y).astype(o_ref.dtype)


def make_expert_forward(w1, b1, w2, b2, *, matmul_dtype=jnp.bfloat16):
    """Expert.forward: flatten to (B, -1) -> Linear -> Tanh -> Linear -> Sigmoid.

    Weight padding / casting is hoisted here (done once). The returned closure
    only pads/casts the activations, and only when they are misaligned.
    """
    d_in, h_dim = w1.shape
    d_out = w2.shape[1]
    mm_bytes = jnp.dtype(matmul_dtype).itemsize

    h_p = _round_up(h_dim, LANE)
    d_out_p = _round_up(d_out, LANE)
    d_in_p = _round_up(d_in, LANE)

    budget = _vmem_budget()

    # K tile: full D_in when it fits, otherwise halve until the double-buffered
    # w1/x K-slabs (at the largest batch tile) fit the per-generation budget.
    tk = d_in_p
    while _vmem_bytes(MAX_TB, tk, h_p, d_out_p, mm_bytes) > budget and tk > 4 * LANE:
        tk = _round_up((tk + 1) // 2, LANE)
    d_in_p = _round_up(d_in_p, tk)           # D_in padding must tile evenly by tk
    k_tiles = d_in_p // tk

    # One-time parameter padding + cast (zero padding is numerically inert).
    w1_p = _pad2d(w1, d_in_p, h_p).astype(matmul_dtype)
    b1_p = _pad2d(b1.reshape(1, -1), 1, h_p).astype(jnp.float32)
    w2_p = _pad2d(w2, h_p, d_out_p).astype(matmul_dtype)
    b2_p = _pad2d(b2.reshape(1, -1), 1, d_out_p).astype(jnp.float32)

    def _pallas_fn(tb, b_p, single_buf):
        def const_spec(shape):
            idx = lambda i, k: (0,) * len(shape)
            if single_buf and hasattr(pl, "Buffered"):
                try:
                    # Constant index_map -> one VMEM buffer is enough; frees
                    # headroom for a larger batch tile (matters most on v7x).
                    return pl.BlockSpec(shape, idx, pipeline_mode=pl.Buffered(1))
                except TypeError:
                    pass
            return pl.BlockSpec(shape, idx)

        est = _vmem_bytes(tb, tk, h_p, d_out_p, mm_bytes)
        vmem_limit = int(min(max(2 * est + (4 << 20), 16 << 20), 100 << 20))

        return pl.pallas_call(
            expert_mlp_kernel,
            out_shape=jax.ShapeDtypeStruct((b_p, d_out_p), jnp.float32),
            grid_spec=pltpu.PrefetchScalarGridSpec(
                num_scalar_prefetch=0,
                grid=(b_p // tb, k_tiles),
                in_specs=[
                    pl.BlockSpec((tb, tk), lambda i, k: (i, k)),     # x K-slabs
                    pl.BlockSpec((tk, h_p), lambda i, k: (k, 0)),    # w1 K-slabs
                    const_spec((1, h_p)),                             # b1 (resident)
                    const_spec((h_p, d_out_p)),                       # w2 (resident)
                    const_spec((1, d_out_p)),                         # b2 (resident)
                ],
                out_specs=pl.BlockSpec((tb, d_out_p), lambda i, k: (i, 0)),
                scratch_shapes=[pltpu.VMEM((tb, h_p), jnp.float32)],
            ),
            compiler_params=pltpu.CompilerParams(
                dimension_semantics=("parallel", "arbitrary"),
                vmem_limit_bytes=vmem_limit,
            ),
        )

    def forward(x_nchw):
        B = x_nchw.shape[0]
        x2d = x_nchw.reshape(B, -1)            # identical to torch .reshape(B, -1)
        assert x2d.shape[1] == d_in, "flattened input does not match Linear fan-in"

        # Batch tile: big for streaming efficiency, >=2 tiles at mid-size
        # batches so v7x's two TensorCores both get work, shrink only if the
        # VMEM budget demands it.
        b_p = _round_up(B, SUBLANE)
        if b_p <= SUBLANE:
            tb = b_p
        elif b_p <= 2 * MAX_TB:
            tb = _round_up(b_p // 2, SUBLANE)
        else:
            tb = MAX_TB
        while _vmem_bytes(tb, tk, h_p, d_out_p, mm_bytes) > budget and tb > SUBLANE:
            tb = max(SUBLANE, _round_up(tb // 2, SUBLANE))
        b_p = _round_up(b_p, tb)

        # Pad only what is misaligned; cast the HBM activation stream to the
        # matmul dtype (halves DMA bytes on the bf16 path).
        x_pad = _pad2d(x2d, b_p, d_in_p).astype(matmul_dtype)

        try:
            out_pad = _pallas_fn(tb, b_p, single_buf=True)(x_pad, w1_p, b1_p, w2_p, b2_p)
        except Exception:
            # Fallback if this JAX build rejects Buffered(1) weight specs.
            out_pad = _pallas_fn(tb, b_p, single_buf=False)(x_pad, w1_p, b1_p, w2_p, b2_p)

        # strip batch / lane padding
        return out_pad[:B, :d_out]

    return forward


if __name__ == "__main__":
    key = jax.random.PRNGKey(0)
    k_x, k_w1, k_b1, k_w2, k_b2 = jax.random.split(key, 5)

    # Small shapes consistent with the forward: NCHW input, flattened by Expert.
    B, C, H, W = 2, 4, 16, 16
    D_in = C * H * W          # 1024
    HID = 32
    D_out = 16

    x = jax.random.normal(k_x, (B, C, H, W), dtype=jnp.float32)

    # Deterministic parameter init (Linear weights stored as (in, out)).
    scale1 = 1.0 / jnp.sqrt(D_in)
    scale2 = 1.0 / jnp.sqrt(HID)
    w1 = jax.random.uniform(k_w1, (D_in, HID), minval=-scale1, maxval=scale1, dtype=jnp.float32)
    b1 = jax.random.uniform(k_b1, (1, HID), minval=-scale1, maxval=scale1, dtype=jnp.float32)
    w2 = jax.random.uniform(k_w2, (HID, D_out), minval=-scale2, maxval=scale2, dtype=jnp.float32)
    b2 = jax.random.uniform(k_b2, (1, D_out), minval=-scale2, maxval=scale2, dtype=jnp.float32)

    # Pure-JAX reference.
    x2d = x.reshape(B, -1)
    ref = jax.nn.sigmoid(jnp.tanh(x2d @ w1 + b1) @ w2 + b2)

    # Exact-match check with f32 matmul inputs (keeps the unit test tight).
    fwd_f32 = make_expert_forward(w1, b1, w2, b2, matmul_dtype=jnp.float32)
    y32 = fwd_f32(x)
    jax.block_until_ready(y32)
    assert y32.shape == (B, D_out)
    assert jnp.allclose(y32, ref, atol=1e-5, rtol=1e-5)

    # Production path: bf16 MXU inputs, f32 accumulation / activations.
    fwd_bf16 = make_expert_forward(w1, b1, w2, b2, matmul_dtype=jnp.bfloat16)
    y16 = fwd_bf16(x)
    jax.block_until_ready(y16)
    assert y16.shape == (B, D_out)
    assert jnp.allclose(y16, ref, atol=3e-2, rtol=3e-2)

    print("KERNEL_OK")
</pallas_src>

<mosaic_0001>
module attributes {stable_mosaic.version = 11 : i64} {
  func.func @expert_mlp_kernel(%arg0: i32, %arg1: i32, %arg2: memref<8x1024xf32, #tpu.memory_space<vmem>>, %arg3: memref<1024x128xf32, #tpu.memory_space<vmem>>, %arg4: memref<1x128xf32, #tpu.memory_space<vmem>>, %arg5: memref<128x128xf32, #tpu.memory_space<vmem>>, %arg6: memref<1x128xf32, #tpu.memory_space<vmem>>, %arg7: memref<8x128xf32, #tpu.memory_space<vmem>>, %arg8: memref<8x128xf32, #tpu.memory_space<vmem>>) attributes {dimension_semantics = [#tpu.dimension_semantics<parallel>, #tpu.dimension_semantics<arbitrary>], iteration_bounds = array<i64: 1, 1>, scalar_prefetch = 0 : i64, scratch_operands = 1 : i64, tpu.core_type = #tpu.core_type<tc>, window_params = [{transform_indices = @transform_0, window_bounds = array<i64: 8, 1024>}, {transform_indices = @transform_1, window_bounds = array<i64: 1024, 128>}, {pipeline_mode = #tpu.pipeline_mode<synchronous>, transform_indices = @transform_2, window_bounds = array<i64: 1, 128>}, {pipeline_mode = #tpu.pipeline_mode<synchronous>, transform_indices = @transform_3, window_bounds = array<i64: 128, 128>}, {pipeline_mode = #tpu.pipeline_mode<synchronous>, transform_indices = @transform_4, window_bounds = array<i64: 1, 128>}, {transform_indices = @transform_5, window_bounds = array<i64: 8, 128>}]} {
    %c0_i32 = arith.constant 0 : i32
    %0 = arith.cmpi eq, %arg1, %c0_i32 : i32
    %1 = arith.extui %0 : i1 to i32
    %c0_i32_0 = arith.constant 0 : i32
    %2 = arith.cmpi ne, %1, %c0_i32_0 : i32
    scf.if %2 {
      %cst_10 = arith.constant 0.000000e+00 : f32
      %12 = vector.broadcast %cst_10 : f32 to vector<8x128xf32>
      %c0_11 = arith.constant 0 : index
      %c0_12 = arith.constant 0 : index
      %13 = vector.load %arg8[%c0_11, %c0_12] : memref<8x128xf32, #tpu.memory_space<vmem>>, vector<8x128xf32>
      tpu.vector_store %arg8[%c0_11, %c0_12], %12 {strides = array<i32>} : memref<8x128xf32, #tpu.memory_space<vmem>>, vector<8x128xf32>,
    } else {
    }
    %c0 = arith.constant 0 : index
    %c0_1 = arith.constant 0 : index
    %3 = vector.load %arg8[%c0, %c0_1] : memref<8x128xf32, #tpu.memory_space<vmem>>, vector<8x128xf32>
    %c0_2 = arith.constant 0 : index
    %c0_3 = arith.constant 0 : index
    %4 = vector.load %arg2[%c0_2, %c0_3] : memref<8x1024xf32, #tpu.memory_space<vmem>>, vector<8x1024xf32>
    %c0_4 = arith.constant 0 : index
    %c0_5 = arith.constant 0 : index
    %5 = vector.load %arg3[%c0_4, %c0_5] : memref<1024x128xf32, #tpu.memory_space<vmem>>, vector<1024x128xf32>
    %cst = arith.constant dense<0.000000e+00> : vector<8x128xf32>
    %6 = tpu.matmul %4, %5, %cst {dimension_numbers = #tpu.dot_dimension_numbers<[1], [0], [0], [1], [0, 0, 1, 1], [], []>} : vector<8x1024xf32>, vector<1024x128xf32>, vector<8x128xf32> -> vector<8x128xf32>
    %7 = arith.addf %3, %6 : vector<8x128xf32>
    %c0_6 = arith.constant 0 : index
    %c0_7 = arith.constant 0 : index
    %8 = vector.load %arg8[%c0_6, %c0_7] : memref<8x128xf32, #tpu.memory_space<vmem>>, vector<8x128xf32>
    tpu.vector_store %arg8[%c0_6, %c0_7], %7 {strides = array<i32>} : memref<8x128xf32, #tpu.memory_space<vmem>>, vector<8x128xf32>,
    %c0_i32_8 = arith.constant 0 : i32
    %9 = arith.cmpi eq, %arg1, %c0_i32_8 : i32
    %10 = arith.extui %9 : i1 to i32
    %c0_i32_9 = arith.constant 0 : i32
    %11 = arith.cmpi ne, %10, %c0_i32_9 : i32
    scf.if %11 {
      %c0_10 = arith.constant 0 : index
      %c0_11 = arith.constant 0 : index
      %12 = vector.load %arg8[%c0_10, %c0_11] : memref<8x128xf32, #tpu.memory_space<vmem>>, vector<8x128xf32>
      %c0_12 = arith.constant 0 : index
      %c0_13 = arith.constant 0 : index
      %13 = vector.load %arg4[%c0_12, %c0_13] : memref<1x128xf32, #tpu.memory_space<vmem>>, vector<1x128xf32>
      %14 = vector.broadcast %13 : vector<1x128xf32> to vector<8x128xf32>
      %15 = arith.addf %12, %14 : vector<8x128xf32>
      %16 = math.tanh %15 : vector<8x128xf32>
      %c0_14 = arith.constant 0 : index
      %c0_15 = arith.constant 0 : index
      %17 = vector.load %arg5[%c0_14, %c0_15] : memref<128x128xf32, #tpu.memory_space<vmem>>, vector<128x128xf32>
      %cst_16 = arith.constant dense<0.000000e+00> : vector<8x128xf32>
      %18 = tpu.matmul %16, %17, %cst_16 {dimension_numbers = #tpu.dot_dimension_numbers<[1], [0], [0], [1], [0, 0, 1, 1], [], []>} : vector<8x128xf32>, vector<128x128xf32>, vector<8x128xf32> -> vector<8x128xf32>
      %c0_17 = arith.constant 0 : index
      %c0_18 = arith.constant 0 : index
      %19 = vector.load %arg6[%c0_17, %c0_18] : memref<1x128xf32, #tpu.memory_space<vmem>>, vector<1x128xf32>
      %20 = vector.broadcast %19 : vector<1x128xf32> to vector<8x128xf32>
      %21 = arith.addf %18, %20 : vector<8x128xf32>
      %22 = arith.negf %21 : vector<8x128xf32>
      %23 = math.exp %22 : vector<8x128xf32>
      %cst_19 = arith.constant 1.000000e+00 : f32
      %24 = vector.broadcast %cst_19 : f32 to vector<8x128xf32>
      %25 = arith.addf %24, %23 : vector<8x128xf32>
      %26 = arith.divf %24, %25 : vector<8x128xf32>
      %c0_20 = arith.constant 0 : index
      %c0_21 = arith.constant 0 : index
      %27 = vector.load %arg7[%c0_20, %c0_21] : memref<8x128xf32, #tpu.memory_space<vmem>>, vector<8x128xf32>
      tpu.vector_store %arg7[%c0_20, %c0_21], %26 {strides = array<i32>} : memref<8x128xf32, #tpu.memory_space<vmem>>, vector<8x128xf32>,
    } else {
    }
    return
  }
  func.func @transform_0(%arg0: i32, %arg1: i32) -> (i32, i32) {
    %c0_i32 = arith.constant 0 : i32
    return %arg0, %arg1 : i32, i32
  }
  func.func @transform_1(%arg0: i32, %arg1: i32) -> (i32, i32) {
    %c0_i32 = arith.constant 0 : i32
    %c0_i32_0 = arith.constant 0 : i32
    return %arg1, %c0_i32 : i32, i32
  }
  func.func @transform_2(%arg0: i32, %arg1: i32) -> (i32, i32) {
    %c0_i32 = arith.constant 0 : i32
    %c0_i32_0 = arith.constant 0 : i32
    %c0_i32_1 = arith.constant 0 : i32
    return %c0_i32, %c0_i32_0 : i32, i32
  }
  func.func @transform_3(%arg0: i32, %arg1: i32) -> (i32, i32) {
    %c0_i32 = arith.constant 0 : i32
    %c0_i32_0 = arith.constant 0 : i32
    %c0_i32_1 = arith.constant 0 : i32
    return %c0_i32, %c0_i32_0 : i32, i32
  }
  func.func @transform_4(%arg0: i32, %arg1: i32) -> (i32, i32) {
    %c0_i32 = arith.constant 0 : i32
    %c0_i32_0 = arith.constant 0 : i32
    %c0_i32_1 = arith.constant 0 : i32
    return %c0_i32, %c0_i32_0 : i32, i32
  }
  func.func @transform_5(%arg0: i32, %arg1: i32) -> (i32, i32) {
    %c0_i32 = arith.constant 0 : i32
    %c0_i32_0 = arith.constant 0 : i32
    return %arg0, %c0_i32 : i32, i32
  }
}

module attributes {stable_mosaic.version = 11 : i64} {
  func.func @expert_mlp_kernel(%arg0: i32, %arg1: i32, %arg2: memref<8x1024xf32, #tpu.memory_space<vmem>>, %arg3: memref<1024x128xf32, #tpu.memory_space<vmem>>, %arg4: memref<1x128xf32, #tpu.memory_space<vmem>>, %arg5: memref<128x128xf32, #tpu.memory_space<vmem>>, %arg6: memref<1x128xf32, #tpu.memory_space<vmem>>, %arg7: memref<8x128xf32, #tpu.memory_space<vmem>>, %arg8: memref<8x128xf32, #tpu.memory_space<vmem>>) attributes {dimension_semantics = [#tpu.dimension_semantics<parallel>, #tpu.dimension_semantics<arbitrary>], iteration_bounds = array<i64: 1, 1>, scalar_prefetch = 0 : i64, scratch_operands = 1 : i64, tpu.core_type = #tpu.core_type<tc>, window_params = [{transform_indices = @transform_0, window_bounds = array<i64: 8, 1024>}, {transform_indices = @transform_1, window_bounds = array<i64: 1024, 128>}, {pipeline_mode = #tpu.pipeline_mode<synchronous>, transform_indices = @transform_2, window_bounds = array<i64: 1, 128>}, {pipeline_mode = #tpu.pipeline_mode<synchronous>, transform_indices = @transform_3, window_bounds = array<i64: 128, 128>}, {pipeline_mode = #tpu.pipeline_mode<synchronous>, transform_indices = @transform_4, window_bounds = array<i64: 1, 128>}, {transform_indices = @transform_5, window_bounds = array<i64: 8, 128>}]} {
    %c0_i32 = arith.constant 0 : i32
    %0 = arith.cmpi eq, %arg1, %c0_i32 : i32
    %1 = arith.extui %0 : i1 to i32
    %c0_i32_0 = arith.constant 0 : i32
    %2 = arith.cmpi ne, %1, %c0_i32_0 : i32
    scf.if %2 {
      %cst_10 = arith.constant 0.000000e+00 : f32
      %12 = vector.broadcast %cst_10 : f32 to vector<8x128xf32>
      %c0_11 = arith.constant 0 : index
      %c0_12 = arith.constant 0 : index
      %13 = vector.load %arg8[%c0_11, %c0_12] : memref<8x128xf32, #tpu.memory_space<vmem>>, vector<8x128xf32>
      tpu.vector_store %arg8[%c0_11, %c0_12], %12 {strides = array<i32>} : memref<8x128xf32, #tpu.memory_space<vmem>>, vector<8x128xf32>,
    } else {
    }
    %c0 = arith.constant 0 : index
    %c0_1 = arith.constant 0 : index
    %3 = vector.load %arg8[%c0, %c0_1] : memref<8x128xf32, #tpu.memory_space<vmem>>, vector<8x128xf32>
    %c0_2 = arith.constant 0 : index
    %c0_3 = arith.constant 0 : index
    %4 = vector.load %arg2[%c0_2, %c0_3] : memref<8x1024xf32, #tpu.memory_space<vmem>>, vector<8x1024xf32>
    %c0_4 = arith.constant 0 : index
    %c0_5 = arith.constant 0 : index
    %5 = vector.load %arg3[%c0_4, %c0_5] : memref<1024x128xf32, #tpu.memory_space<vmem>>, vector<1024x128xf32>
    %cst = arith.constant dense<0.000000e+00> : vector<8x128xf32>
    %6 = tpu.matmul %4, %5, %cst {dimension_numbers = #tpu.dot_dimension_numbers<[1], [0], [0], [1], [0, 0, 1, 1], [], []>} : vector<8x1024xf32>, vector<1024x128xf32>, vector<8x128xf32> -> vector<8x128xf32>
    %7 = arith.addf %3, %6 : vector<8x128xf32>
    %c0_6 = arith.constant 0 : index
    %c0_7 = arith.constant 0 : index
    %8 = vector.load %arg8[%c0_6, %c0_7] : memref<8x128xf32, #tpu.memory_space<vmem>>, vector<8x128xf32>
    tpu.vector_store %arg8[%c0_6, %c0_7], %7 {strides = array<i32>} : memref<8x128xf32, #tpu.memory_space<vmem>>, vector<8x128xf32>,
    %c0_i32_8 = arith.constant 0 : i32
    %9 = arith.cmpi eq, %arg1, %c0_i32_8 : i32
    %10 = arith.extui %9 : i1 to i32
    %c0_i32_9 = arith.constant 0 : i32
    %11 = arith.cmpi ne, %10, %c0_i32_9 : i32
    scf.if %11 {
      %c0_10 = arith.constant 0 : index
      %c0_11 = arith.constant 0 : index
      %12 = vector.load %arg8[%c0_10, %c0_11] : memref<8x128xf32, #tpu.memory_space<vmem>>, vector<8x128xf32>
      %c0_12 = arith.constant 0 : index
      %c0_13 = arith.constant 0 : index
      %13 = vector.load %arg4[%c0_12, %c0_13] : memref<1x128xf32, #tpu.memory_space<vmem>>, vector<1x128xf32>
      %14 = vector.broadcast %13 : vector<1x128xf32> to vector<8x128xf32>
      %15 = arith.addf %12, %14 : vector<8x128xf32>
      %16 = math.tanh %15 : vector<8x128xf32>
      %c0_14 = arith.constant 0 : index
      %c0_15 = arith.constant 0 : index
      %17 = vector.load %arg5[%c0_14, %c0_15] : memref<128x128xf32, #tpu.memory_space<vmem>>, vector<128x128xf32>
      %cst_16 = arith.constant dense<0.000000e+00> : vector<8x128xf32>
      %18 = tpu.matmul %16, %17, %cst_16 {dimension_numbers = #tpu.dot_dimension_numbers<[1], [0], [0], [1], [0, 0, 1, 1], [], []>} : vector<8x128xf32>, vector<128x128xf32>, vector<8x128xf32> -> vector<8x128xf32>
      %c0_17 = arith.constant 0 : index
      %c0_18 = arith.constant 0 : index
      %19 = vector.load %arg6[%c0_17, %c0_18] : memref<1x128xf32, #tpu.memory_space<vmem>>, vector<1x128xf32>
      %20 = vector.broadcast %19 : vector<1x128xf32> to vector<8x128xf32>
      %21 = arith.addf %18, %20 : vector<8x128xf32>
      %22 = arith.negf %21 : vector<8x128xf32>
      %23 = math.exp %22 : vector<8x128xf32>
      %cst_19 = arith.constant 1.000000e+00 : f32
      %24 = vector.broadcast %cst_19 : f32 to vector<8x128xf32>
      %25 = arith.addf %24, %23 : vector<8x128xf32>
      %26 = arith.divf %24, %25 : vector<8x128xf32>
      %c0_20 = arith.constant 0 : index
      %c0_21 = arith.constant 0 : index
      %27 = vector.load %arg7[%c0_20, %c0_21] : memref<8x128xf32, #tpu.memory_space<vmem>>, vector<8x128xf32>
      tpu.vector_store %arg7[%c0_20, %c0_21], %26 {strides = array<i32>} : memref<8x128xf32, #tpu.memory_space<vmem>>, vector<8x128xf32>,
    } else {
    }
    return
  }
  func.func @transform_0(%arg0: i32, %arg1: i32) -> (i32, i32) {
    %c0_i32 = arith.constant 0 : i32
    return %arg0, %arg1 : i32, i32
  }
  func.func @transform_1(%arg0: i32, %arg1: i32) -> (i32, i32) {
    %c0_i32 = arith.constant 0 : i32
    %c0_i32_0 = arith.constant 0 : i32
    return %arg1, %c0_i32 : i32, i32
  }
  func.func @transform_2(%arg0: i32, %arg1: i32) -> (i32, i32) {
    %c0_i32 = arith.constant 0 : i32
    %c0_i32_0 = arith.constant 0 : i32
    %c0_i32_1 = arith.constant 0 : i32
    return %c0_i32, %c0_i32_0 : i32, i32
  }
  func.func @transform_3(%arg0: i32, %arg1: i32) -> (i32, i32) {
    %c0_i32 = arith.constant 0 : i32
    %c0_i32_0 = arith.constant 0 : i32
    %c0_i32_1 = arith.constant 0 : i32
    return %c0_i32, %c0_i32_0 : i32, i32
  }
  func.func @transform_4(%arg0: i32, %arg1: i32) -> (i32, i32) {
    %c0_i32 = arith.constant 0 : i32
    %c0_i32_0 = arith.constant 0 : i32
    %c0_i32_1 = arith.constant 0 : i32
    return %c0_i32, %c0_i32_0 : i32, i32
  }
  func.func @transform_5(%arg0: i32, %arg1: i32) -> (i32, i32) {
    %c0_i32 = arith.constant 0 : i32
    %c0_i32_0 = arith.constant 0 : i32
    return %arg0, %c0_i32 : i32, i32
  }
}

</mosaic_0001>

<llo_original>
// kernel: tpu_custom_call.1
$region0: #{tpu_custom_call.1}
  #allocation0 [shape = 'u32[]', space=smem, size = 0x4, offset = 0x4, fixed_abs, tag = 'smem constant byte address 0x4 - core index']
  #allocation1 [shape = 'u32[144,128]{1,0:T(1,128)}', space=vmem, size = 0x12000, scoped, tag = 'internal scratch']
  #allocation2 [shape = 'f32[8,128]{1,0:T(8,128)}', space=vmem, size = 0x1000, scoped, tag = 'scratch operand']
  %s0 = inlined_call_operand.hbm [shape: f32[8,1024], index: 0, kind: input, shape index: {}]
  %s1 = inlined_call_operand.hbm [shape: f32[1024,128], index: 1, kind: input, shape index: {}]
  %s2 = inlined_call_operand.vmem [shape: f32[1,128], index: 2, kind: input, shape index: {}]
  %s3 = inlined_call_operand.hbm [shape: f32[128,128], index: 3, kind: input, shape index: {}]
  %s4 = inlined_call_operand.vmem [shape: f32[1,128], index: 4, kind: input, shape index: {}]
  %s5 = inlined_call_operand.hbm [shape: f32[8,128], index: 5, kind: output, shape index: {}]
  %s6 = sld [smem:[#allocation0]]
  $region50: #{tpu_custom_call.1} parent=0
    _
  %s8 = ssub.s32 1, %s6
  %s9 = scalar_select 0, %s8, %s6
  $region1: #{tpu_custom_call.1} parent=0
    #allocation3 [shape = 'u8[32768]{0}', space=vmem, size = 0x8000, scoped, tag = 'input window, operand 0, single buffered']
    #allocation4 [shape = 's32[1]{0}', space=sflag, size = 0x4, scoped, tag = 'scoped memory for tpu_custom_call.1']
    #allocation5 [shape = 's32[1]{0}', space=sflag, size = 0x4, scoped, tag = 'scoped memory for tpu_custom_call.1']
    #allocation6 [shape = 'u8[524288]{0}', space=vmem, size = 0x80000, scoped, tag = 'input window, operand 1, single buffered']
    #allocation7 [shape = 's32[1]{0}', space=sflag, size = 0x4, scoped, tag = 'scoped memory for tpu_custom_call.1']
    #allocation8 [shape = 'u8[65536]{0}', space=vmem, size = 0x10000, scoped, tag = 'input window, operand 3, single buffered']
    #allocation9 [shape = 'u8[4096]{0}', space=vmem, size = 0x1000, scoped, tag = 'output window, operand 0, single buffered']
    %10 = vsyncpa [#allocation4], 0
    %11 = vsyncpa [#allocation7], 0
    %12 = vsyncpa [#allocation5], 0
    // Predicated region
    $region2: #{tpu_custom_call.1} parent=1 // pred_check
      _
    $region3: #{tpu_custom_call.1} parent=1 // pred_check_branch
      %14 = sbr.rel (0) target = $region5
    $region4: #{tpu_custom_call.1} parent=1 // pred_region
      %s16 = ssub.s32 1024, 1024
      %17 = vsyncadd [#allocation4], %s16
      %s19 = sshll.u32 [#allocation3], 4
      %s20 = int_to_ptr.vmem [resolvable:$true] %s19
      %22 = dma.hbm_to_vmem [thread:$0]  %s0, 1024, %s20, [#allocation4]
    $region5: #{tpu_custom_call.1} parent=1 // pred_fallthru
      _
    // Predicated region
    $region6: #{tpu_custom_call.1} parent=1 // pred_check
      _
    $region7: #{tpu_custom_call.1} parent=1 // pred_check_branch
      %24 = sbr.rel (0) target = $region9
    $region8: #{tpu_custom_call.1} parent=1 // pred_region
      %s26 = ssub.s32 16384, 16384
      %27 = vsyncadd [#allocation7], %s26
      %s28 = sshll.u32 [#allocation6], 4
      %s29 = int_to_ptr.vmem [resolvable:$true] %s28
      %34 = dma.hbm_to_vmem [thread:$0]  %s1, 16384, %s29, [#allocation7], 128, 128, 8
    $region9: #{tpu_custom_call.1} parent=1 // pred_fallthru
      _
    // Predicated region
    $region10: #{tpu_custom_call.1} parent=1 // pred_check
      _
    $region11: #{tpu_custom_call.1} parent=1 // pred_check_branch
      %36 = sbr.rel (0) target = $region13
    $region12: #{tpu_custom_call.1} parent=1 // pred_region
      _
    $region13: #{tpu_custom_call.1} parent=1 // pred_fallthru
      _
    // Predicated region
    $region14: #{tpu_custom_call.1} parent=1 // pred_check
      _
    $region15: #{tpu_custom_call.1} parent=1 // pred_check_branch
      %38 = sbr.rel (0) target = $region17
    $region16: #{tpu_custom_call.1} parent=1 // pred_region
      %s40 = ssub.s32 2048, 2048
      %41 = vsyncadd [#allocation7], %s40
      %s42 = sshll.u32 [#allocation8], 4
      %s43 = int_to_ptr.vmem [resolvable:$true] %s42
      %48 = dma.hbm_to_vmem [thread:$0]  %s3, 2048, %s43, [#allocation7], 128, 128, 8
    $region17: #{tpu_custom_call.1} parent=1 // pred_fallthru
      _
    // Predicated region
    $region18: #{tpu_custom_call.1} parent=1 // pred_check
      _
    $region19: #{tpu_custom_call.1} parent=1 // pred_check_branch
      %50 = sbr.rel (0) target = $region21
    $region20: #{tpu_custom_call.1} parent=1 // pred_region
      _
    $region21: #{tpu_custom_call.1} parent=1 // pred_fallthru
      _
    // Predicated region
    $region22: #{tpu_custom_call.1} parent=1 // pred_check
      _
    $region23: #{tpu_custom_call.1} parent=1 // pred_check_branch
      %52 = sbr.rel (0) target = $region25
    $region24: #{tpu_custom_call.1} parent=1 // pred_region
      %53 = dma.done [#allocation4], 1024
    $region25: #{tpu_custom_call.1} parent=1 // pred_fallthru
      _
    // Predicated region
    $region26: #{tpu_custom_call.1} parent=1 // pred_check
      _
    $region27: #{tpu_custom_call.1} parent=1 // pred_check_branch
      %55 = sbr.rel (0) target = $region29
    $region28: #{tpu_custom_call.1} parent=1 // pred_region
      %56 = dma.done [#allocation7], 16384
    $region29: #{tpu_custom_call.1} parent=1 // pred_fallthru
      _
    // Predicated region
    $region30: #{tpu_custom_call.1} parent=1 // pred_check
      _
    $region31: #{tpu_custom_call.1} parent=1 // pred_check_branch
      %58 = sbr.rel (0) target = $region33
    $region32: #{tpu_custom_call.1} parent=1 // pred_region
      %59 = dma.done [#allocation7], 2048
    $region33: #{tpu_custom_call.1} parent=1 // pred_fallthru
      _
    %p60 = scmp.eq.s32.totalorder 0, 0
    // Predicated region
    $region34: #{tpu_custom_call.1} parent=1 // pred_check
      %p61 = pneg %p60
    $region35: #{tpu_custom_call.1} parent=1 // pred_check_branch
      %63 = sbr.rel (%p61) target = $region37
    $region36: #{tpu_custom_call.1} parent=1 // pred_region
      %64 = vst [vmem:[#allocation2] sm:$0xff] 0.0
    $region37: #{tpu_custom_call.1} parent=1 // pred_fallthru
      _
    %v65 = vld [vmem:[#allocation2] sm:$0xff]
    %v66 = vld [vmem:[#allocation3] sm:$0xff]
    %v67 = vld [vmem:[#allocation3 + $0x8] sm:$0xff]
    %v68 = vld [vmem:[#allocation3 + $0x10] sm:$0xff]
    %v69 = vld [vmem:[#allocation3 + $0x18] sm:$0xff]
    %v70 = vld [vmem:[#allocation3 + $0x20] sm:$0xff]
    %v71 = vld [vmem:[#allocation3 + $0x28] sm:$0xff]
    %v72 = vld [vmem:[#allocation3 + $0x30] sm:$0xff]
    %v73 = vld [vmem:[#allocation3 + $0x38] sm:$0xff]
    %v74 = vld [vmem:[#allocation6] sm:$0xff]
    %v75 = vld [vmem:[#allocation6 + $0x8] sm:$0xff]
    %v76 = vld [vmem:[#allocation6 + $0x10] sm:$0xff]
    %v77 = vld [vmem:[#allocation6 + $0x18] sm:$0xff]
    %v78 = vld [vmem:[#allocation6 + $0x20] sm:$0xff]
    %v79 = vld [vmem:[#allocation6 + $0x28] sm:$0xff]
    %v80 = vld [vmem:[#allocation6 + $0x30] sm:$0xff]
    %v81 = vld [vmem:[#allocation6 + $0x38] sm:$0xff]
    %v82 = vld [vmem:[#allocation6 + $0x40] sm:$0xff]
    %v83 = vld [vmem:[#allocation6 + $0x48] sm:$0xff]
    %v84 = vld [vmem:[#allocation6 + $0x50] sm:$0xff]
    %v85 = vld [vmem:[#allocation6 + $0x58] sm:$0xff]
    %v86 = vld [vmem:[#allocation6 + $0x60] sm:$0xff]
    %v87 = vld [vmem:[#allocation6 + $0x68] sm:$0xff]
    %v88 = vld [vmem:[#allocation6 + $0x70] sm:$0xff]
    %v89 = vld [vmem:[#allocation6 + $0x78] sm:$0xff]
    %v90 = vld [vmem:[#allocation6 + $0x80] sm:$0xff]
    %v91 = vld [vmem:[#allocation6 + $0x88] sm:$0xff]
    %v92 = vld [vmem:[#allocation6 + $0x90] sm:$0xff]
    %v93 = vld [vmem:[#allocation6 + $0x98] sm:$0xff]
    %v94 = vld [vmem:[#allocation6 + $0xa0] sm:$0xff]
    %v95 = vld [vmem:[#allocation6 + $0xa8] sm:$0xff]
    %v96 = vld [vmem:[#allocation6 + $0xb0] sm:$0xff]
    %v97 = vld [vmem:[#allocation6 + $0xb8] sm:$0xff]
    %v98 = vld [vmem:[#allocation6 + $0xc0] sm:$0xff]
    %v99 = vld [vmem:[#allocation6 + $0xc8] sm:$0xff]
    %v100 = vld [vmem:[#allocation6 + $0xd0] sm:$0xff]
    %v101 = vld [vmem:[#allocation6 + $0xd8] sm:$0xff]
    %v102 = vld [vmem:[#allocation6 + $0xe0] sm:$0xff]
    %v103 = vld [vmem:[#allocation6 + $0xe8] sm:$0xff]
    %v104 = vld [vmem:[#allocation6 + $0xf0] sm:$0xff]
    %v105 = vld [vmem:[#allocation6 + $0xf8] sm:$0xff]
    %v106 = vld [vmem:[#allocation6 + $0x100] sm:$0xff]
    %v107 = vld [vmem:[#allocation6 + $0x108] sm:$0xff]
    %v108 = vld [vmem:[#allocation6 + $0x110] sm:$0xff]
    %v109 = vld [vmem:[#allocation6 + $0x118] sm:$0xff]
    %v110 = vld [vmem:[#allocation6 + $0x120] sm:$0xff]
    %v111 = vld [vmem:[#allocation6 + $0x128] sm:$0xff]
    %v112 = vld [vmem:[#allocation6 + $0x130] sm:$0xff]
    %v113 = vld [vmem:[#allocation6 + $0x138] sm:$0xff]
    %v114 = vld [vmem:[#allocation6 + $0x140] sm:$0xff]
    %v115 = vld [vmem:[#allocation6 + $0x148] sm:$0xff]
    %v116 = vld [vmem:[#allocation6 + $0x150] sm:$0xff]
    %v117 = vld [vmem:[#allocation6 + $0x158] sm:$0xff]
    %v118 = vld [vmem:[#allocation6 + $0x160] sm:$0xff]
    %v119 = vld [vmem:[#allocation6 + $0x168] sm:$0xff]
    %v120 = vld [vmem:[#allocation6 + $0x170] sm:$0xff]
    %v121 = vld [vmem:[#allocation6 + $0x178] sm:$0xff]
    %v122 = vld [vmem:[#allocation6 + $0x180] sm:$0xff]
    %v123 = vld [vmem:[#allocation6 + $0x188] sm:$0xff]
    %v124 = vld [vmem:[#allocation6 + $0x190] sm:$0xff]
    %v125 = vld [vmem:[#allocation6 + $0x198] sm:$0xff]
    %v126 = vld [vmem:[#allocation6 + $0x1a0] sm:$0xff]
    %v127 = vld [vmem:[#allocation6 + $0x1a8] sm:$0xff]
    %v128 = vld [vmem:[#allocation6 + $0x1b0] sm:$0xff]
    %v129 = vld [vmem:[#allocation6 + $0x1b8] sm:$0xff]
    %v130 = vld [vmem:[#allocation6 + $0x1c0] sm:$0xff]
    %v131 = vld [vmem:[#allocation6 + $0x1c8] sm:$0xff]
    %v132 = vld [vmem:[#allocation6 + $0x1d0] sm:$0xff]
    %v133 = vld [vmem:[#allocation6 + $0x1d8] sm:$0xff]
    %v134 = vld [vmem:[#allocation6 + $0x1e0] sm:$0xff]
    %v135 = vld [vmem:[#allocation6 + $0x1e8] sm:$0xff]
    %v136 = vld [vmem:[#allocation6 + $0x1f0] sm:$0xff]
    %v137 = vld [vmem:[#allocation6 + $0x1f8] sm:$0xff]
    %v138 = vld [vmem:[#allocation6 + $0x200] sm:$0xff]
    %v139 = vld [vmem:[#allocation6 + $0x208] sm:$0xff]
    %v140 = vld [vmem:[#allocation6 + $0x210] sm:$0xff]
    %v141 = vld [vmem:[#allocation6 + $0x218] sm:$0xff]
    %v142 = vld [vmem:[#allocation6 + $0x220] sm:$0xff]
    %v143 = vld [vmem:[#allocation6 + $0x228] sm:$0xff]
    %v144 = vld [vmem:[#allocation6 + $0x230] sm:$0xff]
    %v145 = vld [vmem:[#allocation6 + $0x238] sm:$0xff]
    %v146 = vld [vmem:[#allocation6 + $0x240] sm:$0xff]
    %v147 = vld [vmem:[#allocation6 + $0x248] sm:$0xff]
    %v148 = vld [vmem:[#allocation6 + $0x250] sm:$0xff]
    %v149 = vld [vmem:[#allocation6 + $0x258] sm:$0xff]
    %v150 = vld [vmem:[#allocation6 + $0x260] sm:$0xff]
    %v151 = vld [vmem:[#allocation6 + $0x268] sm:$0xff]
    %v152 = vld [vmem:[#allocation6 + $0x270] sm:$0xff]
    %v153 = vld [vmem:[#allocation6 + $0x278] sm:$0xff]
    %v154 = vld [vmem:[#allocation6 + $0x280] sm:$0xff]
    %v155 = vld [vmem:[#allocation6 + $0x288] sm:$0xff]
    %v156 = vld [vmem:[#allocation6 + $0x290] sm:$0xff]
    %v157 = vld [vmem:[#allocation6 + $0x298] sm:$0xff]
    %v158 = vld [vmem:[#allocation6 + $0x2a0] sm:$0xff]
    %v159 = vld [vmem:[#allocation6 + $0x2a8] sm:$0xff]
    %v160 = vld [vmem:[#allocation6 + $0x2b0] sm:$0xff]
    %v161 = vld [vmem:[#allocation6 + $0x2b8] sm:$0xff]
    %v162 = vld [vmem:[#allocation6 + $0x2c0] sm:$0xff]
    %v163 = vld [vmem:[#allocation6 + $0x2c8] sm:$0xff]
    %v164 = vld [vmem:[#allocation6 + $0x2d0] sm:$0xff]
    %v165 = vld [vmem:[#allocation6 + $0x2d8] sm:$0xff]
    %v166 = vld [vmem:[#allocation6 + $0x2e0] sm:$0xff]
    %v167 = vld [vmem:[#allocation6 + $0x2e8] sm:$0xff]
    %v168 = vld [vmem:[#allocation6 + $0x2f0] sm:$0xff]
    %v169 = vld [vmem:[#allocation6 + $0x2f8] sm:$0xff]
    %v170 = vld [vmem:[#allocation6 + $0x300] sm:$0xff]
    %v171 = vld [vmem:[#allocation6 + $0x308] sm:$0xff]
    %v172 = vld [vmem:[#allocation6 + $0x310] sm:$0xff]
    %v173 = vld [vmem:[#allocation6 + $0x318] sm:$0xff]
    %v174 = vld [vmem:[#allocation6 + $0x320] sm:$0xff]
    %v175 = vld [vmem:[#allocation6 + $0x328] sm:$0xff]
    %v176 = vld [vmem:[#allocation6 + $0x330] sm:$0xff]
    %v177 = vld [vmem:[#allocation6 + $0x338] sm:$0xff]
    %v178 = vld [vmem:[#allocation6 + $0x340] sm:$0xff]
    %v179 = vld [vmem:[#allocation6 + $0x348] sm:$0xff]
    %v180 = vld [vmem:[#allocation6 + $0x350] sm:$0xff]
    %v181 = vld [vmem:[#allocation6 + $0x358] sm:$0xff]
    %v182 = vld [vmem:[#allocation6 + $0x360] sm:$0xff]
    %v183 = vld [vmem:[#allocation6 + $0x368] sm:$0xff]
    %v184 = vld [vmem:[#allocation6 + $0x370] sm:$0xff]
    %v185 = vld [vmem:[#allocation6 + $0x378] sm:$0xff]
    %v186 = vld [vmem:[#allocation6 + $0x380] sm:$0xff]
    %v187 = vld [vmem:[#allocation6 + $0x388] sm:$0xff]
    %v188 = vld [vmem:[#allocation6 + $0x390] sm:$0xff]
    %v189 = vld [vmem:[#allocation6 + $0x398] sm:$0xff]
    %v190 = vld [vmem:[#allocation6 + $0x3a0] sm:$0xff]
    %v191 = vld [vmem:[#allocation6 + $0x3a8] sm:$0xff]
    %v192 = vld [vmem:[#allocation6 + $0x3b0] sm:$0xff]
    %v193 = vld [vmem:[#allocation6 + $0x3b8] sm:$0xff]
    %v194 = vld [vmem:[#allocation6 + $0x3c0] sm:$0xff]
    %v195 = vld [vmem:[#allocation6 + $0x3c8] sm:$0xff]
    %v196 = vld [vmem:[#allocation6 + $0x3d0] sm:$0xff]
    %v197 = vld [vmem:[#allocation6 + $0x3d8] sm:$0xff]
    %v198 = vld [vmem:[#allocation6 + $0x3e0] sm:$0xff]
    %v199 = vld [vmem:[#allocation6 + $0x3e8] sm:$0xff]
    %v200 = vld [vmem:[#allocation6 + $0x3f0] sm:$0xff]
    %v201 = vld [vmem:[#allocation6 + $0x3f8] sm:$0xff]
    %202 = vmatprep.subr.mxu0 0.0
    %203 = vmatpush1.msra.mxu0 %v89
    %204 = vmatprep.subr.mxu0 0.0
    %205 = vmatpush1.msra.mxu0 %v88
    %206 = vmatprep.subr.mxu0 0.0
    %207 = vmatpush1.msra.mxu0 %v87
    %208 = vmatprep.subr.mxu0 0.0
    %209 = vmatpush1.msra.mxu0 %v86
    %210 = vmatprep.subr.mxu0 0.0
    %211 = vmatpush1.msra.mxu0 %v85
    %212 = vmatprep.subr.mxu0 0.0
    %213 = vmatpush1.msra.mxu0 %v84
    %214 = vmatprep.subr.mxu0 0.0
    %215 = vmatpush1.msra.mxu0 %v83
    %216 = vmatprep.subr.mxu0 0.0
    %217 = vmatpush1.msra.mxu0 %v82
    %218 = vmatprep.subr.mxu0 0.0
    %219 = vmatpush1.msra.mxu0 %v81
    %220 = vmatprep.subr.mxu0 0.0
    %221 = vmatpush1.msra.mxu0 %v80
    %222 = vmatprep.subr.mxu0 0.0
    %223 = vmatpush1.msra.mxu0 %v79
    %224 = vmatprep.subr.mxu0 0.0
    %225 = vmatpush1.msra.mxu0 %v78
    %226 = vmatprep.subr.mxu0 0.0
    %227 = vmatpush1.msra.mxu0 %v77
    %228 = vmatprep.subr.mxu0 0.0
    %229 = vmatpush1.msra.mxu0 %v76
    %230 = vmatprep.subr.mxu0 0.0
    %231 = vmatpush1.msra.mxu0 %v75
    %232 = vmatprep.subr.mxu0 0.0
    %233 = vmatpush1.msra.mxu0 %v74
    %234 = vmatprep.subr.mxu0 0.0
    %235 = vmatpush2.msra.mxu0 %v105
    %236 = vmatprep.subr.mxu0 0.0
    %237 = vmatpush2.msra.mxu0 %v104
    %238 = vmatprep.subr.mxu0 0.0
    %239 = vmatpush2.msra.mxu0 %v103
    %240 = vmatprep.subr.mxu0 0.0
    %241 = vmatpush2.msra.mxu0 %v102
    %242 = vmatprep.subr.mxu0 0.0
    %243 = vmatpush2.msra.mxu0 %v101
    %244 = vmatprep.subr.mxu0 0.0
    %245 = vmatpush2.msra.mxu0 %v100
    %246 = vmatprep.subr.mxu0 0.0
    %247 = vmatpush2.msra.mxu0 %v99
    %248 = vmatprep.subr.mxu0 0.0
    %249 = vmatpush2.msra.mxu0 %v98
    %250 = vmatprep.subr.mxu0 0.0
    %251 = vmatpush2.msra.mxu0 %v97
    %252 = vmatprep.subr.mxu0 0.0
    %253 = vmatpush2.msra.mxu0 %v96
    %254 = vmatprep.subr.mxu0 0.0
    %255 = vmatpush2.msra.mxu0 %v95
    %256 = vmatprep.subr.mxu0 0.0
    %257 = vmatpush2.msra.mxu0 %v94
    %258 = vmatprep.subr.mxu0 0.0
    %259 = vmatpush2.msra.mxu0 %v93
    %260 = vmatprep.subr.mxu0 0.0
    %261 = vmatpush2.msra.mxu0 %v92
    %262 = vmatprep.subr.mxu0 0.0
    %263 = vmatpush2.msra.mxu0 %v91
    %264 = vmatprep.subr.mxu0 0.0
    %265 = vmatpush2.msra.mxu0 %v90
    %266 = vmatprep.mubr.f32.mxu0 %v67
    %267 = vmatmul.mubr.f32.gmra.mxu0 %v66
    %v268 = vpop.f32.mrf.mxu0
    %v269 = vadd.f32 0.0, %v268
    %v270 = vpop.f32.mrf.mxu0
    %271 = vdwg.mxu0
    %272 = vmatprep.subr.mxu0 0.0
    %273 = vmatpush1.msra.mxu0 %v121
    %274 = vmatprep.subr.mxu0 0.0
    %275 = vmatpush1.msra.mxu0 %v120
    %276 = vmatprep.subr.mxu0 0.0
    %277 = vmatpush1.msra.mxu0 %v119
    %278 = vmatprep.subr.mxu0 0.0
    %279 = vmatpush1.msra.mxu0 %v118
    %280 = vmatprep.subr.mxu0 0.0
    %281 = vmatpush1.msra.mxu0 %v117
    %282 = vmatprep.subr.mxu0 0.0
    %283 = vmatpush1.msra.mxu0 %v116
    %284 = vmatprep.subr.mxu0 0.0
    %285 = vmatpush1.msra.mxu0 %v115
    %286 = vmatprep.subr.mxu0 0.0
    %287 = vmatpush1.msra.mxu0 %v114
    %288 = vmatprep.subr.mxu0 0.0
    %289 = vmatpush1.msra.mxu0 %v113
    %290 = vmatprep.subr.mxu0 0.0
    %291 = vmatpush1.msra.mxu0 %v112
    %292 = vmatprep.subr.mxu0 0.0
    %293 = vmatpush1.msra.mxu0 %v111
    %294 = vmatprep.subr.mxu0 0.0
    %295 = vmatpush1.msra.mxu0 %v110
    %296 = vmatprep.subr.mxu0 0.0
    %297 = vmatpush1.msra.mxu0 %v109
    %298 = vmatprep.subr.mxu0 0.0
    %299 = vmatpush1.msra.mxu0 %v108
    %300 = vmatprep.subr.mxu0 0.0
    %301 = vmatpush1.msra.mxu0 %v107
    %302 = vmatprep.subr.mxu0 0.0
    %303 = vmatpush1.msra.mxu0 %v106
    %304 = vmatprep.subr.mxu0 0.0
    %305 = vmatpush2.msra.mxu0 %v137
    %306 = vmatprep.subr.mxu0 0.0
    %307 = vmatpush2.msra.mxu0 %v136
    %308 = vmatprep.subr.mxu0 0.0
    %309 = vmatpush2.msra.mxu0 %v135
    %310 = vmatprep.subr.mxu0 0.0
    %311 = vmatpush2.msra.mxu0 %v134
    %312 = vmatprep.subr.mxu0 0.0
    %313 = vmatpush2.msra.mxu0 %v133
    %314 = vmatprep.subr.mxu0 0.0
    %315 = vmatpush2.msra.mxu0 %v132
    %316 = vmatprep.subr.mxu0 0.0
    %317 = vmatpush2.msra.mxu0 %v131
    %318 = vmatprep.subr.mxu0 0.0
    %319 = vmatpush2.msra.mxu0 %v130
    %320 = vmatprep.subr.mxu0 0.0
    %321 = vmatpush2.msra.mxu0 %v129
    %322 = vmatprep.subr.mxu0 0.0
    %323 = vmatpush2.msra.mxu0 %v128
    %324 = vmatprep.subr.mxu0 0.0
    %325 = vmatpush2.msra.mxu0 %v127
    %326 = vmatprep.subr.mxu0 0.0
    %327 = vmatpush2.msra.mxu0 %v126
    %328 = vmatprep.subr.mxu0 0.0
    %329 = vmatpush2.msra.mxu0 %v125
    %330 = vmatprep.subr.mxu0 0.0
    %331 = vmatpush2.msra.mxu0 %v124
    %332 = vmatprep.subr.mxu0 0.0
    %333 = vmatpush2.msra.mxu0 %v123
    %334 = vmatprep.subr.mxu0 0.0
    %335 = vmatpush2.msra.mxu0 %v122
    %336 = vmatprep.mubr.f32.mxu0 %v69
    %337 = vmatmul.mubr.f32.gmra.mxu0 %v68
    %v338 = vpop.f32.mrf.mxu0
    %v339 = vadd.f32 %v269, %v338
    %v340 = vpop.f32.mrf.mxu0
    %341 = vdwg.mxu0
    %342 = vmatprep.subr.mxu0 0.0
    %343 = vmatpush1.msra.mxu0 %v153
    %344 = vmatprep.subr.mxu0 0.0
    %345 = vmatpush1.msra.mxu0 %v152
    %346 = vmatprep.subr.mxu0 0.0
    %347 = vmatpush1.msra.mxu0 %v151
    %348 = vmatprep.subr.mxu0 0.0
    %349 = vmatpush1.msra.mxu0 %v150
    %350 = vmatprep.subr.mxu0 0.0
    %351 = vmatpush1.msra.mxu0 %v149
    %352 = vmatprep.subr.mxu0 0.0
    %353 = vmatpush1.msra.mxu0 %v148
    %354 = vmatprep.subr.mxu0 0.0
    %355 = vmatpush1.msra.mxu0 %v147
    %356 = vmatprep.subr.mxu0 0.0
    %357 = vmatpush1.msra.mxu0 %v146
    %358 = vmatprep.subr.mxu0 0.0
    %359 = vmatpush1.msra.mxu0 %v145
    %360 = vmatprep.subr.mxu0 0.0
    %361 = vmatpush1.msra.mxu0 %v144
    %362 = vmatprep.subr.mxu0 0.0
    %363 = vmatpush1.msra.mxu0 %v143
    %364 = vmatprep.subr.mxu0 0.0
    %365 = vmatpush1.msra.mxu0 %v142
    %366 = vmatprep.subr.mxu0 0.0
    %367 = vmatpush1.msra.mxu0 %v141
    %368 = vmatprep.subr.mxu0 0.0
    %369 = vmatpush1.msra.mxu0 %v140
    %370 = vmatprep.subr.mxu0 0.0
    %371 = vmatpush1.msra.mxu0 %v139
    %372 = vmatprep.subr.mxu0 0.0
    %373 = vmatpush1.msra.mxu0 %v138
    %374 = vmatprep.subr.mxu0 0.0
    %375 = vmatpush2.msra.mxu0 %v169
    %376 = vmatprep.subr.mxu0 0.0
    %377 = vmatpush2.msra.mxu0 %v168
    %378 = vmatprep.subr.mxu0 0.0
    %379 = vmatpush2.msra.mxu0 %v167
    %380 = vmatprep.subr.mxu0 0.0
    %381 = vmatpush2.msra.mxu0 %v166
    %382 = vmatprep.subr.mxu0 0.0
    %383 = vmatpush2.msra.mxu0 %v165
    %384 = vmatprep.subr.mxu0 0.0
    %385 = vmatpush2.msra.mxu0 %v164
    %386 = vmatprep.subr.mxu0 0.0
    %387 = vmatpush2.msra.mxu0 %v163
    %388 = vmatprep.subr.mxu0 0.0
    %389 = vmatpush2.msra.mxu0 %v162
    %390 = vmatprep.subr.mxu0 0.0
    %391 = vmatpush2.msra.mxu0 %v161
    %392 = vmatprep.subr.mxu0 0.0
    %393 = vmatpush2.msra.mxu0 %v160
    %394 = vmatprep.subr.mxu0 0.0
    %395 = vmatpush2.msra.mxu0 %v159
    %396 = vmatprep.subr.mxu0 0.0
    %397 = vmatpush2.msra.mxu0 %v158
    %398 = vmatprep.subr.mxu0 0.0
    %399 = vmatpush2.msra.mxu0 %v157
    %400 = vmatprep.subr.mxu0 0.0
    %401 = vmatpush2.msra.mxu0 %v156
    %402 = vmatprep.subr.mxu0 0.0
    %403 = vmatpush2.msra.mxu0 %v155
    %404 = vmatprep.subr.mxu0 0.0
    %405 = vmatpush2.msra.mxu0 %v154
    %406 = vmatprep.mubr.f32.mxu0 %v71
    %407 = vmatmul.mubr.f32.gmra.mxu0 %v70
    %v408 = vpop.f32.mrf.mxu0
    %v409 = vadd.f32 %v339, %v408
    %v410 = vpop.f32.mrf.mxu0
    %411 = vdwg.mxu0
    %412 = vmatprep.subr.mxu0 0.0
    %413 = vmatpush1.msra.mxu0 %v185
    %414 = vmatprep.subr.mxu0 0.0
    %415 = vmatpush1.msra.mxu0 %v184
    %416 = vmatprep.subr.mxu0 0.0
    %417 = vmatpush1.msra.mxu0 %v183
    %418 = vmatprep.subr.mxu0 0.0
    %419 = vmatpush1.msra.mxu0 %v182
    %420 = vmatprep.subr.mxu0 0.0
    %421 = vmatpush1.msra.mxu0 %v181
    %422 = vmatprep.subr.mxu0 0.0
    %423 = vmatpush1.msra.mxu0 %v180
    %424 = vmatprep.subr.mxu0 0.0
    %425 = vmatpush1.msra.mxu0 %v179
    %426 = vmatprep.subr.mxu0 0.0
    %427 = vmatpush1.msra.mxu0 %v178
    %428 = vmatprep.subr.mxu0 0.0
    %429 = vmatpush1.msra.mxu0 %v177
    %430 = vmatprep.subr.mxu0 0.0
    %431 = vmatpush1.msra.mxu0 %v176
    %432 = vmatprep.subr.mxu0 0.0
    %433 = vmatpush1.msra.mxu0 %v175
    %434 = vmatprep.subr.mxu0 0.0
    %435 = vmatpush1.msra.mxu0 %v174
    %436 = vmatprep.subr.mxu0 0.0
    %437 = vmatpush1.msra.mxu0 %v173
    %438 = vmatprep.subr.mxu0 0.0
    %439 = vmatpush1.msra.mxu0 %v172
    %440 = vmatprep.subr.mxu0 0.0
    %441 = vmatpush1.msra.mxu0 %v171
    %442 = vmatprep.subr.mxu0 0.0
    %443 = vmatpush1.msra.mxu0 %v170
    %444 = vmatprep.subr.mxu0 0.0
    %445 = vmatpush2.msra.mxu0 %v201
    %446 = vmatprep.subr.mxu0 0.0
    %447 = vmatpush2.msra.mxu0 %v200
    %448 = vmatprep.subr.mxu0 0.0
    %449 = vmatpush2.msra.mxu0 %v199
    %450 = vmatprep.subr.mxu0 0.0
    %451 = vmatpush2.msra.mxu0 %v198
    %452 = vmatprep.subr.mxu0 0.0
    %453 = vmatpush2.msra.mxu0 %v197
    %454 = vmatprep.subr.mxu0 0.0
    %455 = vmatpush2.msra.mxu0 %v196
    %456 = vmatprep.subr.mxu0 0.0
    %457 = vmatpush2.msra.mxu0 %v195
    %458 = vmatprep.subr.mxu0 0.0
    %459 = vmatpush2.msra.mxu0 %v194
    %460 = vmatprep.subr.mxu0 0.0
    %461 = vmatpush2.msra.mxu0 %v193
    %462 = vmatprep.subr.mxu0 0.0
    %463 = vmatpush2.msra.mxu0 %v192
    %464 = vmatprep.subr.mxu0 0.0
    %465 = vmatpush2.msra.mxu0 %v191
    %466 = vmatprep.subr.mxu0 0.0
    %467 = vmatpush2.msra.mxu0 %v190
    %468 = vmatprep.subr.mxu0 0.0
    %469 = vmatpush2.msra.mxu0 %v189
    %470 = vmatprep.subr.mxu0 0.0
    %471 = vmatpush2.msra.mxu0 %v188
    %472 = vmatprep.subr.mxu0 0.0
    %473 = vmatpush2.msra.mxu0 %v187
    %474 = vmatprep.subr.mxu0 0.0
    %475 = vmatpush2.msra.mxu0 %v186
    %476 = vmatprep.mubr.f32.mxu0 %v73
    %477 = vmatmul.mubr.f32.gmra.mxu0 %v72
    %v478 = vpop.f32.mrf.mxu0
    %v479 = vadd.f32 %v409, %v478
    %v480 = vpop.f32.mrf.mxu0
    %481 = vdwg.mxu0
    %v482 = vadd.f32 %v65, %v479
    %483 = vst [vmem:[#allocation2] sm:$0xff] %v482
    // Predicated region
    $region38: #{tpu_custom_call.1} parent=1 // pred_check
      %p484 = pneg %p60
    $region39: #{tpu_custom_call.1} parent=1 // pred_check_branch
      %486 = sbr.rel (%p484) target = $region41
    $region40: #{tpu_custom_call.1} parent=1 // pred_region
      %v487 = vld [vmem:[#allocation2] sm:$0xff]
      %v488 = vld [vmem:[%s2] sm:$0x1]
      %v490 = vlaneseq
      %v491 = vshrl.u32 %v490, 7
      %v492 = vsub.s32 0, %v491
      %v493 = vrot.slane %v488, %v492
      %v495 = vadd.f32 %v487, %v493
      %v496 = vtanh.pop %v495
      %v497 = vld [vmem:[#allocation8] sm:$0xff]
      %v498 = vld [vmem:[#allocation8 + $0x8] sm:$0xff]
      %v499 = vld [vmem:[#allocation8 + $0x10] sm:$0xff]
      %v500 = vld [vmem:[#allocation8 + $0x18] sm:$0xff]
      %v501 = vld [vmem:[#allocation8 + $0x20] sm:$0xff]
      %v502 = vld [vmem:[#allocation8 + $0x28] sm:$0xff]
      %v503 = vld [vmem:[#allocation8 + $0x30] sm:$0xff]
      %v504 = vld [vmem:[#allocation8 + $0x38] sm:$0xff]
      %v505 = vld [vmem:[#allocation8 + $0x40] sm:$0xff]
      %v506 = vld [vmem:[#allocation8 + $0x48] sm:$0xff]
      %v507 = vld [vmem:[#allocation8 + $0x50] sm:$0xff]
      %v508 = vld [vmem:[#allocation8 + $0x58] sm:$0xff]
      %v509 = vld [vmem:[#allocation8 + $0x60] sm:$0xff]
      %v510 = vld [vmem:[#allocation8 + $0x68] sm:$0xff]
      %v511 = vld [vmem:[#allocation8 + $0x70] sm:$0xff]
      %v512 = vld [vmem:[#allocation8 + $0x78] sm:$0xff]
      %v513 = vld [vmem:[%s4] sm:$0x1]
      %v515 = vlaneseq
      %v516 = vshrl.u32 %v515, 7
      %v517 = vsub.s32 0, %v516
      %v518 = vrot.slane %v513, %v517
      %520 = vmatprep.subr.mxu0 0.0
      %521 = vmatpush1.msra.mxu0 %v512
      %522 = vmatprep.subr.mxu0 0.0
      %523 = vmatpush1.msra.mxu0 %v511
      %524 = vmatprep.subr.mxu0 0.0
      %525 = vmatpush1.msra.mxu0 %v510
      %526 = vmatprep.subr.mxu0 0.0
      %527 = vmatpush1.msra.mxu0 %v509
      %528 = vmatprep.subr.mxu0 0.0
      %529 = vmatpush1.msra.mxu0 %v508
      %530 = vmatprep.subr.mxu0 0.0
      %531 = vmatpush1.msra.mxu0 %v507
      %532 = vmatprep.subr.mxu0 0.0
      %533 = vmatpush1.msra.mxu0 %v506
      %534 = vmatprep.subr.mxu0 0.0
      %535 = vmatpush1.msra.mxu0 %v505
      %536 = vmatprep.subr.mxu0 0.0
      %537 = vmatpush1.msra.mxu0 %v504
      %538 = vmatprep.subr.mxu0 0.0
      %539 = vmatpush1.msra.mxu0 %v503
      %540 = vmatprep.subr.mxu0 0.0
      %541 = vmatpush1.msra.mxu0 %v502
      %542 = vmatprep.subr.mxu0 0.0
      %543 = vmatpush1.msra.mxu0 %v501
      %544 = vmatprep.subr.mxu0 0.0
      %545 = vmatpush1.msra.mxu0 %v500
      %546 = vmatprep.subr.mxu0 0.0
      %547 = vmatpush1.msra.mxu0 %v499
      %548 = vmatprep.subr.mxu0 0.0
      %549 = vmatpush1.msra.mxu0 %v498
      %550 = vmatprep.subr.mxu0 0.0
      %551 = vmatpush1.msra.mxu0 %v497
      %552 = vmatprep.subr.mxu0 0.0
      %553 = vmatpush2.msra.mxu0 0.0
      %554 = vmatprep.subr.mxu0 0.0
      %555 = vmatpush2.msra.mxu0 0.0
      %556 = vmatprep.subr.mxu0 0.0
      %557 = vmatpush2.msra.mxu0 0.0
      %558 = vmatprep.subr.mxu0 0.0
      %559 = vmatpush2.msra.mxu0 0.0
      %560 = vmatprep.subr.mxu0 0.0
      %561 = vmatpush2.msra.mxu0 0.0
      %562 = vmatprep.subr.mxu0 0.0
      %563 = vmatpush2.msra.mxu0 0.0
      %564 = vmatprep.subr.mxu0 0.0
      %565 = vmatpush2.msra.mxu0 0.0
      %566 = vmatprep.subr.mxu0 0.0
      %567 = vmatpush2.msra.mxu0 0.0
      %568 = vmatprep.subr.mxu0 0.0
      %569 = vmatpush2.msra.mxu0 0.0
      %570 = vmatprep.subr.mxu0 0.0
      %571 = vmatpush2.msra.mxu0 0.0
      %572 = vmatprep.subr.mxu0 0.0
      %573 = vmatpush2.msra.mxu0 0.0
      %574 = vmatprep.subr.mxu0 0.0
      %575 = vmatpush2.msra.mxu0 0.0
      %576 = vmatprep.subr.mxu0 0.0
      %577 = vmatpush2.msra.mxu0 0.0
      %578 = vmatprep.subr.mxu0 0.0
      %579 = vmatpush2.msra.mxu0 0.0
      %580 = vmatprep.subr.mxu0 0.0
      %581 = vmatpush2.msra.mxu0 0.0
      %582 = vmatprep.subr.mxu0 0.0
      %583 = vmatpush2.msra.mxu0 0.0
      %584 = vmatprep.mubr.f32.mxu0 0.0
      %585 = vmatmul.mubr.f32.gmra.mxu0 %v496
      %v586 = vpop.f32.mrf.mxu0
      %v587 = vadd.f32 %v518, %v586
      %v588 = vpop.f32.mrf.mxu0
      %589 = vdwg.mxu0
      %v590 = vxor.u32 %v587, 2147483648
      %v591 = vmul.f32 %v590, 1.442695
      %v592 = vpow.pop %v591
      %v593 = vadd.f32 %v592, 1.0
      %v594 = vrcp.pop %v593
      %v595 = vmul.f32 1.0, %v594
      %596 = vst [vmem:[#allocation9] sm:$0xff] %v595
    $region41: #{tpu_custom_call.1} parent=1 // pred_fallthru
      _
    // Predicated region
    $region42: #{tpu_custom_call.1} parent=1 // pred_check
      _
    $region43: #{tpu_custom_call.1} parent=1 // pred_check_branch
      %598 = sbr.rel (0) target = $region45
    $region44: #{tpu_custom_call.1} parent=1 // pred_region
      %s600 = ssub.s32 128, 128
      %601 = vsyncadd [#allocation5], %s600
      %s603 = sshll.u32 [#allocation9], 4
      %s604 = int_to_ptr.vmem [resolvable:$true] %s603
      %606 = dma.vmem_to_hbm [thread:$0]  %s604, 128, %s5, [#allocation5]
    $region45: #{tpu_custom_call.1} parent=1 // pred_fallthru
      _
    // Predicated region
    $region46: #{tpu_custom_call.1} parent=1 // pred_check
      _
    $region47: #{tpu_custom_call.1} parent=1 // pred_check_branch
      %608 = sbr.rel (0) target = $region49
    $region48: #{tpu_custom_call.1} parent=1 // pred_region
      %609 = dma.done [#allocation5], 128
    $region49: #{tpu_custom_call.1} parent=1 // pred_fallthru
      _
    %610 = vsyncpa [#allocation4], 1
    %611 = vsyncpa [#allocation7], 1
    %612 = vsyncpa [#allocation5], 1

// kernel: tpu_custom_call.1
$region0: #{tpu_custom_call.1}
  #allocation0 [shape = 'u32[]', space=smem, size = 0x4, offset = 0x4, fixed_abs, tag = 'smem constant byte address 0x4 - core index']
  #allocation1 [shape = 'u32[144,128]{1,0:T(1,128)}', space=vmem, size = 0x12000, scoped, tag = 'internal scratch']
  #allocation2 [shape = 'f32[8,128]{1,0:T(8,128)}', space=vmem, size = 0x1000, scoped, tag = 'scratch operand']
  %s0 = inlined_call_operand.hbm [shape: f32[8,1024], index: 0, kind: input, shape index: {}]
  %s1 = inlined_call_operand.hbm [shape: f32[1024,128], index: 1, kind: input, shape index: {}]
  %s2 = inlined_call_operand.vmem [shape: f32[1,128], index: 2, kind: input, shape index: {}]
  %s3 = inlined_call_operand.hbm [shape: f32[128,128], index: 3, kind: input, shape index: {}]
  %s4 = inlined_call_operand.vmem [shape: f32[1,128], index: 4, kind: input, shape index: {}]
  %s5 = inlined_call_operand.hbm [shape: f32[8,128], index: 5, kind: output, shape index: {}]
  %s6 = sld [smem:[#allocation0]]
  $region50: #{tpu_custom_call.1} parent=0
    _
  %s8 = ssub.s32 1, %s6
  %s9 = scalar_select 0, %s8, %s6
  $region1: #{tpu_custom_call.1} parent=0
    #allocation3 [shape = 'u8[32768]{0}', space=vmem, size = 0x8000, scoped, tag = 'input window, operand 0, single buffered']
    #allocation4 [shape = 's32[1]{0}', space=sflag, size = 0x4, scoped, tag = 'scoped memory for tpu_custom_call.1']
    #allocation5 [shape = 's32[1]{0}', space=sflag, size = 0x4, scoped, tag = 'scoped memory for tpu_custom_call.1']
    #allocation6 [shape = 'u8[524288]{0}', space=vmem, size = 0x80000, scoped, tag = 'input window, operand 1, single buffered']
    #allocation7 [shape = 's32[1]{0}', space=sflag, size = 0x4, scoped, tag = 'scoped memory for tpu_custom_call.1']
    #allocation8 [shape = 'u8[65536]{0}', space=vmem, size = 0x10000, scoped, tag = 'input window, operand 3, single buffered']
    #allocation9 [shape = 'u8[4096]{0}', space=vmem, size = 0x1000, scoped, tag = 'output window, operand 0, single buffered']
    %10 = vsyncpa [#allocation4], 0
    %11 = vsyncpa [#allocation7], 0
    %12 = vsyncpa [#allocation5], 0
    // Predicated region
    $region2: #{tpu_custom_call.1} parent=1 // pred_check
      _
    $region3: #{tpu_custom_call.1} parent=1 // pred_check_branch
      %14 = sbr.rel (0) target = $region5
    $region4: #{tpu_custom_call.1} parent=1 // pred_region
      %s16 = ssub.s32 1024, 1024
      %17 = vsyncadd [#allocation4], %s16
      %s19 = sshll.u32 [#allocation3], 4
      %s20 = int_to_ptr.vmem [resolvable:$true] %s19
      %22 = dma.hbm_to_vmem [thread:$0]  %s0, 1024, %s20, [#allocation4]
    $region5: #{tpu_custom_call.1} parent=1 // pred_fallthru
      _
    // Predicated region
    $region6: #{tpu_custom_call.1} parent=1 // pred_check
      _
    $region7: #{tpu_custom_call.1} parent=1 // pred_check_branch
      %24 = sbr.rel (0) target = $region9
    $region8: #{tpu_custom_call.1} parent=1 // pred_region
      %s26 = ssub.s32 16384, 16384
      %27 = vsyncadd [#allocation7], %s26
      %s28 = sshll.u32 [#allocation6], 4
      %s29 = int_to_ptr.vmem [resolvable:$true] %s28
      %34 = dma.hbm_to_vmem [thread:$0]  %s1, 16384, %s29, [#allocation7], 128, 128, 8
    $region9: #{tpu_custom_call.1} parent=1 // pred_fallthru
      _
    // Predicated region
    $region10: #{tpu_custom_call.1} parent=1 // pred_check
      _
    $region11: #{tpu_custom_call.1} parent=1 // pred_check_branch
      %36 = sbr.rel (0) target = $region13
    $region12: #{tpu_custom_call.1} parent=1 // pred_region
      _
    $region13: #{tpu_custom_call.1} parent=1 // pred_fallthru
      _
    // Predicated region
    $region14: #{tpu_custom_call.1} parent=1 // pred_check
      _
    $region15: #{tpu_custom_call.1} parent=1 // pred_check_branch
      %38 = sbr.rel (0) target = $region17
    $region16: #{tpu_custom_call.1} parent=1 // pred_region
      %s40 = ssub.s32 2048, 2048
      %41 = vsyncadd [#allocation7], %s40
      %s42 = sshll.u32 [#allocation8], 4
      %s43 = int_to_ptr.vmem [resolvable:$true] %s42
      %48 = dma.hbm_to_vmem [thread:$0]  %s3, 2048, %s43, [#allocation7], 128, 128, 8
    $region17: #{tpu_custom_call.1} parent=1 // pred_fallthru
      _
    // Predicated region
    $region18: #{tpu_custom_call.1} parent=1 // pred_check
      _
    $region19: #{tpu_custom_call.1} parent=1 // pred_check_branch
      %50 = sbr.rel (0) target = $region21
    $region20: #{tpu_custom_call.1} parent=1 // pred_region
      _
    $region21: #{tpu_custom_call.1} parent=1 // pred_fallthru
      _
    // Predicated region
    $region22: #{tpu_custom_call.1} parent=1 // pred_check
      _
    $region23: #{tpu_custom_call.1} parent=1 // pred_check_branch
      %52 = sbr.rel (0) target = $region25
    $region24: #{tpu_custom_call.1} parent=1 // pred_region
      %53 = dma.done [#allocation4], 1024
    $region25: #{tpu_custom_call.1} parent=1 // pred_fallthru
      _
    // Predicated region
    $region26: #{tpu_custom_call.1} parent=1 // pred_check
      _
    $region27: #{tpu_custom_call.1} parent=1 // pred_check_branch
      %55 = sbr.rel (0) target = $region29
    $region28: #{tpu_custom_call.1} parent=1 // pred_region
      %56 = dma.done [#allocation7], 16384
    $region29: #{tpu_custom_call.1} parent=1 // pred_fallthru
      _
    // Predicated region
    $region30: #{tpu_custom_call.1} parent=1 // pred_check
      _
    $region31: #{tpu_custom_call.1} parent=1 // pred_check_branch
      %58 = sbr.rel (0) target = $region33
    $region32: #{tpu_custom_call.1} parent=1 // pred_region
      %59 = dma.done [#allocation7], 2048
    $region33: #{tpu_custom_call.1} parent=1 // pred_fallthru
      _
    %p60 = scmp.eq.s32.totalorder 0, 0
    // Predicated region
    $region34: #{tpu_custom_call.1} parent=1 // pred_check
      %p61 = pneg %p60
    $region35: #{tpu_custom_call.1} parent=1 // pred_check_branch
      %63 = sbr.rel (%p61) target = $region37
    $region36: #{tpu_custom_call.1} parent=1 // pred_region
      %64 = vst [vmem:[#allocation2] sm:$0xff] 0.0
    $region37: #{tpu_custom_call.1} parent=1 // pred_fallthru
      _
    %v65 = vld [vmem:[#allocation2] sm:$0xff]
    %v66 = vld [vmem:[#allocation3] sm:$0xff]
    %v67 = vld [vmem:[#allocation3 + $0x8] sm:$0xff]
    %v68 = vld [vmem:[#allocation3 + $0x10] sm:$0xff]
    %v69 = vld [vmem:[#allocation3 + $0x18] sm:$0xff]
    %v70 = vld [vmem:[#allocation3 + $0x20] sm:$0xff]
    %v71 = vld [vmem:[#allocation3 + $0x28] sm:$0xff]
    %v72 = vld [vmem:[#allocation3 + $0x30] sm:$0xff]
    %v73 = vld [vmem:[#allocation3 + $0x38] sm:$0xff]
    %v74 = vld [vmem:[#allocation6] sm:$0xff]
    %v75 = vld [vmem:[#allocation6 + $0x8] sm:$0xff]
    %v76 = vld [vmem:[#allocation6 + $0x10] sm:$0xff]
    %v77 = vld [vmem:[#allocation6 + $0x18] sm:$0xff]
    %v78 = vld [vmem:[#allocation6 + $0x20] sm:$0xff]
    %v79 = vld [vmem:[#allocation6 + $0x28] sm:$0xff]
    %v80 = vld [vmem:[#allocation6 + $0x30] sm:$0xff]
    %v81 = vld [vmem:[#allocation6 + $0x38] sm:$0xff]
    %v82 = vld [vmem:[#allocation6 + $0x40] sm:$0xff]
    %v83 = vld [vmem:[#allocation6 + $0x48] sm:$0xff]
    %v84 = vld [vmem:[#allocation6 + $0x50] sm:$0xff]
    %v85 = vld [vmem:[#allocation6 + $0x58] sm:$0xff]
    %v86 = vld [vmem:[#allocation6 + $0x60] sm:$0xff]
    %v87 = vld [vmem:[#allocation6 + $0x68] sm:$0xff]
    %v88 = vld [vmem:[#allocation6 + $0x70] sm:$0xff]
    %v89 = vld [vmem:[#allocation6 + $0x78] sm:$0xff]
    %v90 = vld [vmem:[#allocation6 + $0x80] sm:$0xff]
    %v91 = vld [vmem:[#allocation6 + $0x88] sm:$0xff]
    %v92 = vld [vmem:[#allocation6 + $0x90] sm:$0xff]
    %v93 = vld [vmem:[#allocation6 + $0x98] sm:$0xff]
    %v94 = vld [vmem:[#allocation6 + $0xa0] sm:$0xff]
    %v95 = vld [vmem:[#allocation6 + $0xa8] sm:$0xff]
    %v96 = vld [vmem:[#allocation6 + $0xb0] sm:$0xff]
    %v97 = vld [vmem:[#allocation6 + $0xb8] sm:$0xff]
    %v98 = vld [vmem:[#allocation6 + $0xc0] sm:$0xff]
    %v99 = vld [vmem:[#allocation6 + $0xc8] sm:$0xff]
    %v100 = vld [vmem:[#allocation6 + $0xd0] sm:$0xff]
    %v101 = vld [vmem:[#allocation6 + $0xd8] sm:$0xff]
    %v102 = vld [vmem:[#allocation6 + $0xe0] sm:$0xff]
    %v103 = vld [vmem:[#allocation6 + $0xe8] sm:$0xff]
    %v104 = vld [vmem:[#allocation6 + $0xf0] sm:$0xff]
    %v105 = vld [vmem:[#allocation6 + $0xf8] sm:$0xff]
    %v106 = vld [vmem:[#allocation6 + $0x100] sm:$0xff]
    %v107 = vld [vmem:[#allocation6 + $0x108] sm:$0xff]
    %v108 = vld [vmem:[#allocation6 + $0x110] sm:$0xff]
    %v109 = vld [vmem:[#allocation6 + $0x118] sm:$0xff]
    %v110 = vld [vmem:[#allocation6 + $0x120] sm:$0xff]
    %v111 = vld [vmem:[#allocation6 + $0x128] sm:$0xff]
    %v112 = vld [vmem:[#allocation6 + $0x130] sm:$0xff]
    %v113 = vld [vmem:[#allocation6 + $0x138] sm:$0xff]
    %v114 = vld [vmem:[#allocation6 + $0x140] sm:$0xff]
    %v115 = vld [vmem:[#allocation6 + $0x148] sm:$0xff]
    %v116 = vld [vmem:[#allocation6 + $0x150] sm:$0xff]
    %v117 = vld [vmem:[#allocation6 + $0x158] sm:$0xff]
    %v118 = vld [vmem:[#allocation6 + $0x160] sm:$0xff]
    %v119 = vld [vmem:[#allocation6 + $0x168] sm:$0xff]
    %v120 = vld [vmem:[#allocation6 + $0x170] sm:$0xff]
    %v121 = vld [vmem:[#allocation6 + $0x178] sm:$0xff]
    %v122 = vld [vmem:[#allocation6 + $0x180] sm:$0xff]
    %v123 = vld [vmem:[#allocation6 + $0x188] sm:$0xff]
    %v124 = vld [vmem:[#allocation6 + $0x190] sm:$0xff]
    %v125 = vld [vmem:[#allocation6 + $0x198] sm:$0xff]
    %v126 = vld [vmem:[#allocation6 + $0x1a0] sm:$0xff]
    %v127 = vld [vmem:[#allocation6 + $0x1a8] sm:$0xff]
    %v128 = vld [vmem:[#allocation6 + $0x1b0] sm:$0xff]
    %v129 = vld [vmem:[#allocation6 + $0x1b8] sm:$0xff]
    %v130 = vld [vmem:[#allocation6 + $0x1c0] sm:$0xff]
    %v131 = vld [vmem:[#allocation6 + $0x1c8] sm:$0xff]
    %v132 = vld [vmem:[#allocation6 + $0x1d0] sm:$0xff]
    %v133 = vld [vmem:[#allocation6 + $0x1d8] sm:$0xff]
    %v134 = vld [vmem:[#allocation6 + $0x1e0] sm:$0xff]
    %v135 = vld [vmem:[#allocation6 + $0x1e8] sm:$0xff]
    %v136 = vld [vmem:[#allocation6 + $0x1f0] sm:$0xff]
    %v137 = vld [vmem:[#allocation6 + $0x1f8] sm:$0xff]
    %v138 = vld [vmem:[#allocation6 + $0x200] sm:$0xff]
    %v139 = vld [vmem:[#allocation6 + $0x208] sm:$0xff]
    %v140 = vld [vmem:[#allocation6 + $0x210] sm:$0xff]
    %v141 = vld [vmem:[#allocation6 + $0x218] sm:$0xff]
    %v142 = vld [vmem:[#allocation6 + $0x220] sm:$0xff]
    %v143 = vld [vmem:[#allocation6 + $0x228] sm:$0xff]
    %v144 = vld [vmem:[#allocation6 + $0x230] sm:$0xff]
    %v145 = vld [vmem:[#allocation6 + $0x238] sm:$0xff]
    %v146 = vld [vmem:[#allocation6 + $0x240] sm:$0xff]
    %v147 = vld [vmem:[#allocation6 + $0x248] sm:$0xff]
    %v148 = vld [vmem:[#allocation6 + $0x250] sm:$0xff]
    %v149 = vld [vmem:[#allocation6 + $0x258] sm:$0xff]
    %v150 = vld [vmem:[#allocation6 + $0x260] sm:$0xff]
    %v151 = vld [vmem:[#allocation6 + $0x268] sm:$0xff]
    %v152 = vld [vmem:[#allocation6 + $0x270] sm:$0xff]
    %v153 = vld [vmem:[#allocation6 + $0x278] sm:$0xff]
    %v154 = vld [vmem:[#allocation6 + $0x280] sm:$0xff]
    %v155 = vld [vmem:[#allocation6 + $0x288] sm:$0xff]
    %v156 = vld [vmem:[#allocation6 + $0x290] sm:$0xff]
    %v157 = vld [vmem:[#allocation6 + $0x298] sm:$0xff]
    %v158 = vld [vmem:[#allocation6 + $0x2a0] sm:$0xff]
    %v159 = vld [vmem:[#allocation6 + $0x2a8] sm:$0xff]
    %v160 = vld [vmem:[#allocation6 + $0x2b0] sm:$0xff]
    %v161 = vld [vmem:[#allocation6 + $0x2b8] sm:$0xff]
    %v162 = vld [vmem:[#allocation6 + $0x2c0] sm:$0xff]
    %v163 = vld [vmem:[#allocation6 + $0x2c8] sm:$0xff]
    %v164 = vld [vmem:[#allocation6 + $0x2d0] sm:$0xff]
    %v165 = vld [vmem:[#allocation6 + $0x2d8] sm:$0xff]
    %v166 = vld [vmem:[#allocation6 + $0x2e0] sm:$0xff]
    %v167 = vld [vmem:[#allocation6 + $0x2e8] sm:$0xff]
    %v168 = vld [vmem:[#allocation6 + $0x2f0] sm:$0xff]
    %v169 = vld [vmem:[#allocation6 + $0x2f8] sm:$0xff]
    %v170 = vld [vmem:[#allocation6 + $0x300] sm:$0xff]
    %v171 = vld [vmem:[#allocation6 + $0x308] sm:$0xff]
    %v172 = vld [vmem:[#allocation6 + $0x310] sm:$0xff]
    %v173 = vld [vmem:[#allocation6 + $0x318] sm:$0xff]
    %v174 = vld [vmem:[#allocation6 + $0x320] sm:$0xff]
    %v175 = vld [vmem:[#allocation6 + $0x328] sm:$0xff]
    %v176 = vld [vmem:[#allocation6 + $0x330] sm:$0xff]
    %v177 = vld [vmem:[#allocation6 + $0x338] sm:$0xff]
    %v178 = vld [vmem:[#allocation6 + $0x340] sm:$0xff]
    %v179 = vld [vmem:[#allocation6 + $0x348] sm:$0xff]
    %v180 = vld [vmem:[#allocation6 + $0x350] sm:$0xff]
    %v181 = vld [vmem:[#allocation6 + $0x358] sm:$0xff]
    %v182 = vld [vmem:[#allocation6 + $0x360] sm:$0xff]
    %v183 = vld [vmem:[#allocation6 + $0x368] sm:$0xff]
    %v184 = vld [vmem:[#allocation6 + $0x370] sm:$0xff]
    %v185 = vld [vmem:[#allocation6 + $0x378] sm:$0xff]
    %v186 = vld [vmem:[#allocation6 + $0x380] sm:$0xff]
    %v187 = vld [vmem:[#allocation6 + $0x388] sm:$0xff]
    %v188 = vld [vmem:[#allocation6 + $0x390] sm:$0xff]
    %v189 = vld [vmem:[#allocation6 + $0x398] sm:$0xff]
    %v190 = vld [vmem:[#allocation6 + $0x3a0] sm:$0xff]
    %v191 = vld [vmem:[#allocation6 + $0x3a8] sm:$0xff]
    %v192 = vld [vmem:[#allocation6 + $0x3b0] sm:$0xff]
    %v193 = vld [vmem:[#allocation6 + $0x3b8] sm:$0xff]
    %v194 = vld [vmem:[#allocation6 + $0x3c0] sm:$0xff]
    %v195 = vld [vmem:[#allocation6 + $0x3c8] sm:$0xff]
    %v196 = vld [vmem:[#allocation6 + $0x3d0] sm:$0xff]
    %v197 = vld [vmem:[#allocation6 + $0x3d8] sm:$0xff]
    %v198 = vld [vmem:[#allocation6 + $0x3e0] sm:$0xff]
    %v199 = vld [vmem:[#allocation6 + $0x3e8] sm:$0xff]
    %v200 = vld [vmem:[#allocation6 + $0x3f0] sm:$0xff]
    %v201 = vld [vmem:[#allocation6 + $0x3f8] sm:$0xff]
    %202 = vmatprep.subr.mxu0 0.0
    %203 = vmatpush1.msra.mxu0 %v89
    %204 = vmatprep.subr.mxu0 0.0
    %205 = vmatpush1.msra.mxu0 %v88
    %206 = vmatprep.subr.mxu0 0.0
    %207 = vmatpush1.msra.mxu0 %v87
    %208 = vmatprep.subr.mxu0 0.0
    %209 = vmatpush1.msra.mxu0 %v86
    %210 = vmatprep.subr.mxu0 0.0
    %211 = vmatpush1.msra.mxu0 %v85
    %212 = vmatprep.subr.mxu0 0.0
    %213 = vmatpush1.msra.mxu0 %v84
    %214 = vmatprep.subr.mxu0 0.0
    %215 = vmatpush1.msra.mxu0 %v83
    %216 = vmatprep.subr.mxu0 0.0
    %217 = vmatpush1.msra.mxu0 %v82
    %218 = vmatprep.subr.mxu0 0.0
    %219 = vmatpush1.msra.mxu0 %v81
    %220 = vmatprep.subr.mxu0 0.0
    %221 = vmatpush1.msra.mxu0 %v80
    %222 = vmatprep.subr.mxu0 0.0
    %223 = vmatpush1.msra.mxu0 %v79
    %224 = vmatprep.subr.mxu0 0.0
    %225 = vmatpush1.msra.mxu0 %v78
    %226 = vmatprep.subr.mxu0 0.0
    %227 = vmatpush1.msra.mxu0 %v77
    %228 = vmatprep.subr.mxu0 0.0
    %229 = vmatpush1.msra.mxu0 %v76
    %230 = vmatprep.subr.mxu0 0.0
    %231 = vmatpush1.msra.mxu0 %v75
    %232 = vmatprep.subr.mxu0 0.0
    %233 = vmatpush1.msra.mxu0 %v74
    %234 = vmatprep.subr.mxu0 0.0
    %235 = vmatpush2.msra.mxu0 %v105
    %236 = vmatprep.subr.mxu0 0.0
    %237 = vmatpush2.msra.mxu0 %v104
    %238 = vmatprep.subr.mxu0 0.0
    %239 = vmatpush2.msra.mxu0 %v103
    %240 = vmatprep.subr.mxu0 0.0
    %241 = vmatpush2.msra.mxu0 %v102
    %242 = vmatprep.subr.mxu0 0.0
    %243 = vmatpush2.msra.mxu0 %v101
    %244 = vmatprep.subr.mxu0 0.0
    %245 = vmatpush2.msra.mxu0 %v100
    %246 = vmatprep.subr.mxu0 0.0
    %247 = vmatpush2.msra.mxu0 %v99
    %248 = vmatprep.subr.mxu0 0.0
    %249 = vmatpush2.msra.mxu0 %v98
    %250 = vmatprep.subr.mxu0 0.0
    %251 = vmatpush2.msra.mxu0 %v97
    %252 = vmatprep.subr.mxu0 0.0
    %253 = vmatpush2.msra.mxu0 %v96
    %254 = vmatprep.subr.mxu0 0.0
    %255 = vmatpush2.msra.mxu0 %v95
    %256 = vmatprep.subr.mxu0 0.0
    %257 = vmatpush2.msra.mxu0 %v94
    %258 = vmatprep.subr.mxu0 0.0
    %259 = vmatpush2.msra.mxu0 %v93
    %260 = vmatprep.subr.mxu0 0.0
    %261 = vmatpush2.msra.mxu0 %v92
    %262 = vmatprep.subr.mxu0 0.0
    %263 = vmatpush2.msra.mxu0 %v91
    %264 = vmatprep.subr.mxu0 0.0
    %265 = vmatpush2.msra.mxu0 %v90
    %266 = vmatprep.mubr.f32.mxu0 %v67
    %267 = vmatmul.mubr.f32.gmra.mxu0 %v66
    %v268 = vpop.f32.mrf.mxu0
    %v269 = vadd.f32 0.0, %v268
    %v270 = vpop.f32.mrf.mxu0
    %271 = vdwg.mxu0
    %272 = vmatprep.subr.mxu0 0.0
    %273 = vmatpush1.msra.mxu0 %v121
    %274 = vmatprep.subr.mxu0 0.0
    %275 = vmatpush1.msra.mxu0 %v120
    %276 = vmatprep.subr.mxu0 0.0
    %277 = vmatpush1.msra.mxu0 %v119
    %278 = vmatprep.subr.mxu0 0.0
    %279 = vmatpush1.msra.mxu0 %v118
    %280 = vmatprep.subr.mxu0 0.0
    %281 = vmatpush1.msra.mxu0 %v117
    %282 = vmatprep.subr.mxu0 0.0
    %283 = vmatpush1.msra.mxu0 %v116
    %284 = vmatprep.subr.mxu0 0.0
    %285 = vmatpush1.msra.mxu0 %v115
    %286 = vmatprep.subr.mxu0 0.0
    %287 = vmatpush1.msra.mxu0 %v114
    %288 = vmatprep.subr.mxu0 0.0
    %289 = vmatpush1.msra.mxu0 %v113
    %290 = vmatprep.subr.mxu0 0.0
    %291 = vmatpush1.msra.mxu0 %v112
    %292 = vmatprep.subr.mxu0 0.0
    %293 = vmatpush1.msra.mxu0 %v111
    %294 = vmatprep.subr.mxu0 0.0
    %295 = vmatpush1.msra.mxu0 %v110
    %296 = vmatprep.subr.mxu0 0.0
    %297 = vmatpush1.msra.mxu0 %v109
    %298 = vmatprep.subr.mxu0 0.0
    %299 = vmatpush1.msra.mxu0 %v108
    %300 = vmatprep.subr.mxu0 0.0
    %301 = vmatpush1.msra.mxu0 %v107
    %302 = vmatprep.subr.mxu0 0.0
    %303 = vmatpush1.msra.mxu0 %v106
    %304 = vmatprep.subr.mxu0 0.0
    %305 = vmatpush2.msra.mxu0 %v137
    %306 = vmatprep.subr.mxu0 0.0
    %307 = vmatpush2.msra.mxu0 %v136
    %308 = vmatprep.subr.mxu0 0.0
    %309 = vmatpush2.msra.mxu0 %v135
    %310 = vmatprep.subr.mxu0 0.0
    %311 = vmatpush2.msra.mxu0 %v134
    %312 = vmatprep.subr.mxu0 0.0
    %313 = vmatpush2.msra.mxu0 %v133
    %314 = vmatprep.subr.mxu0 0.0
    %315 = vmatpush2.msra.mxu0 %v132
    %316 = vmatprep.subr.mxu0 0.0
    %317 = vmatpush2.msra.mxu0 %v131
    %318 = vmatprep.subr.mxu0 0.0
    %319 = vmatpush2.msra.mxu0 %v130
    %320 = vmatprep.subr.mxu0 0.0
    %321 = vmatpush2.msra.mxu0 %v129
    %322 = vmatprep.subr.mxu0 0.0
    %323 = vmatpush2.msra.mxu0 %v128
    %324 = vmatprep.subr.mxu0 0.0
    %325 = vmatpush2.msra.mxu0 %v127
    %326 = vmatprep.subr.mxu0 0.0
    %327 = vmatpush2.msra.mxu0 %v126
    %328 = vmatprep.subr.mxu0 0.0
    %329 = vmatpush2.msra.mxu0 %v125
    %330 = vmatprep.subr.mxu0 0.0
    %331 = vmatpush2.msra.mxu0 %v124
    %332 = vmatprep.subr.mxu0 0.0
    %333 = vmatpush2.msra.mxu0 %v123
    %334 = vmatprep.subr.mxu0 0.0
    %335 = vmatpush2.msra.mxu0 %v122
    %336 = vmatprep.mubr.f32.mxu0 %v69
    %337 = vmatmul.mubr.f32.gmra.mxu0 %v68
    %v338 = vpop.f32.mrf.mxu0
    %v339 = vadd.f32 %v269, %v338
    %v340 = vpop.f32.mrf.mxu0
    %341 = vdwg.mxu0
    %342 = vmatprep.subr.mxu0 0.0
    %343 = vmatpush1.msra.mxu0 %v153
    %344 = vmatprep.subr.mxu0 0.0
    %345 = vmatpush1.msra.mxu0 %v152
    %346 = vmatprep.subr.mxu0 0.0
    %347 = vmatpush1.msra.mxu0 %v151
    %348 = vmatprep.subr.mxu0 0.0
    %349 = vmatpush1.msra.mxu0 %v150
    %350 = vmatprep.subr.mxu0 0.0
    %351 = vmatpush1.msra.mxu0 %v149
    %352 = vmatprep.subr.mxu0 0.0
    %353 = vmatpush1.msra.mxu0 %v148
    %354 = vmatprep.subr.mxu0 0.0
    %355 = vmatpush1.msra.mxu0 %v147
    %356 = vmatprep.subr.mxu0 0.0
    %357 = vmatpush1.msra.mxu0 %v146
    %358 = vmatprep.subr.mxu0 0.0
    %359 = vmatpush1.msra.mxu0 %v145
    %360 = vmatprep.subr.mxu0 0.0
    %361 = vmatpush1.msra.mxu0 %v144
    %362 = vmatprep.subr.mxu0 0.0
    %363 = vmatpush1.msra.mxu0 %v143
    %364 = vmatprep.subr.mxu0 0.0
    %365 = vmatpush1.msra.mxu0 %v142
    %366 = vmatprep.subr.mxu0 0.0
    %367 = vmatpush1.msra.mxu0 %v141
    %368 = vmatprep.subr.mxu0 0.0
    %369 = vmatpush1.msra.mxu0 %v140
    %370 = vmatprep.subr.mxu0 0.0
    %371 = vmatpush1.msra.mxu0 %v139
    %372 = vmatprep.subr.mxu0 0.0
    %373 = vmatpush1.msra.mxu0 %v138
    %374 = vmatprep.subr.mxu0 0.0
    %375 = vmatpush2.msra.mxu0 %v169
    %376 = vmatprep.subr.mxu0 0.0
    %377 = vmatpush2.msra.mxu0 %v168
    %378 = vmatprep.subr.mxu0 0.0
    %379 = vmatpush2.msra.mxu0 %v167
    %380 = vmatprep.subr.mxu0 0.0
    %381 = vmatpush2.msra.mxu0 %v166
    %382 = vmatprep.subr.mxu0 0.0
    %383 = vmatpush2.msra.mxu0 %v165
    %384 = vmatprep.subr.mxu0 0.0
    %385 = vmatpush2.msra.mxu0 %v164
    %386 = vmatprep.subr.mxu0 0.0
    %387 = vmatpush2.msra.mxu0 %v163
    %388 = vmatprep.subr.mxu0 0.0
    %389 = vmatpush2.msra.mxu0 %v162
    %390 = vmatprep.subr.mxu0 0.0
    %391 = vmatpush2.msra.mxu0 %v161
    %392 = vmatprep.subr.mxu0 0.0
    %393 = vmatpush2.msra.mxu0 %v160
    %394 = vmatprep.subr.mxu0 0.0
    %395 = vmatpush2.msra.mxu0 %v159
    %396 = vmatprep.subr.mxu0 0.0
    %397 = vmatpush2.msra.mxu0 %v158
    %398 = vmatprep.subr.mxu0 0.0
    %399 = vmatpush2.msra.mxu0 %v157
    %400 = vmatprep.subr.mxu0 0.0
    %401 = vmatpush2.msra.mxu0 %v156
    %402 = vmatprep.subr.mxu0 0.0
    %403 = vmatpush2.msra.mxu0 %v155
    %404 = vmatprep.subr.mxu0 0.0
    %405 = vmatpush2.msra.mxu0 %v154
    %406 = vmatprep.mubr.f32.mxu0 %v71
    %407 = vmatmul.mubr.f32.gmra.mxu0 %v70
    %v408 = vpop.f32.mrf.mxu0
    %v409 = vadd.f32 %v339, %v408
    %v410 = vpop.f32.mrf.mxu0
    %411 = vdwg.mxu0
    %412 = vmatprep.subr.mxu0 0.0
    %413 = vmatpush1.msra.mxu0 %v185
    %414 = vmatprep.subr.mxu0 0.0
    %415 = vmatpush1.msra.mxu0 %v184
    %416 = vmatprep.subr.mxu0 0.0
    %417 = vmatpush1.msra.mxu0 %v183
    %418 = vmatprep.subr.mxu0 0.0
    %419 = vmatpush1.msra.mxu0 %v182
    %420 = vmatprep.subr.mxu0 0.0
    %421 = vmatpush1.msra.mxu0 %v181
    %422 = vmatprep.subr.mxu0 0.0
    %423 = vmatpush1.msra.mxu0 %v180
    %424 = vmatprep.subr.mxu0 0.0
    %425 = vmatpush1.msra.mxu0 %v179
    %426 = vmatprep.subr.mxu0 0.0
    %427 = vmatpush1.msra.mxu0 %v178
    %428 = vmatprep.subr.mxu0 0.0
    %429 = vmatpush1.msra.mxu0 %v177
    %430 = vmatprep.subr.mxu0 0.0
    %431 = vmatpush1.msra.mxu0 %v176
    %432 = vmatprep.subr.mxu0 0.0
    %433 = vmatpush1.msra.mxu0 %v175
    %434 = vmatprep.subr.mxu0 0.0
    %435 = vmatpush1.msra.mxu0 %v174
    %436 = vmatprep.subr.mxu0 0.0
    %437 = vmatpush1.msra.mxu0 %v173
    %438 = vmatprep.subr.mxu0 0.0
    %439 = vmatpush1.msra.mxu0 %v172
    %440 = vmatprep.subr.mxu0 0.0
    %441 = vmatpush1.msra.mxu0 %v171
    %442 = vmatprep.subr.mxu0 0.0
    %443 = vmatpush1.msra.mxu0 %v170
    %444 = vmatprep.subr.mxu0 0.0
    %445 = vmatpush2.msra.mxu0 %v201
    %446 = vmatprep.subr.mxu0 0.0
    %447 = vmatpush2.msra.mxu0 %v200
    %448 = vmatprep.subr.mxu0 0.0
    %449 = vmatpush2.msra.mxu0 %v199
    %450 = vmatprep.subr.mxu0 0.0
    %451 = vmatpush2.msra.mxu0 %v198
    %452 = vmatprep.subr.mxu0 0.0
    %453 = vmatpush2.msra.mxu0 %v197
    %454 = vmatprep.subr.mxu0 0.0
    %455 = vmatpush2.msra.mxu0 %v196
    %456 = vmatprep.subr.mxu0 0.0
    %457 = vmatpush2.msra.mxu0 %v195
    %458 = vmatprep.subr.mxu0 0.0
    %459 = vmatpush2.msra.mxu0 %v194
    %460 = vmatprep.subr.mxu0 0.0
    %461 = vmatpush2.msra.mxu0 %v193
    %462 = vmatprep.subr.mxu0 0.0
    %463 = vmatpush2.msra.mxu0 %v192
    %464 = vmatprep.subr.mxu0 0.0
    %465 = vmatpush2.msra.mxu0 %v191
    %466 = vmatprep.subr.mxu0 0.0
    %467 = vmatpush2.msra.mxu0 %v190
    %468 = vmatprep.subr.mxu0 0.0
    %469 = vmatpush2.msra.mxu0 %v189
    %470 = vmatprep.subr.mxu0 0.0
    %471 = vmatpush2.msra.mxu0 %v188
    %472 = vmatprep.subr.mxu0 0.0
    %473 = vmatpush2.msra.mxu0 %v187
    %474 = vmatprep.subr.mxu0 0.0
    %475 = vmatpush2.msra.mxu0 %v186
    %476 = vmatprep.mubr.f32.mxu0 %v73
    %477 = vmatmul.mubr.f32.gmra.mxu0 %v72
    %v478 = vpop.f32.mrf.mxu0
    %v479 = vadd.f32 %v409, %v478
    %v480 = vpop.f32.mrf.mxu0
    %481 = vdwg.mxu0
    %v482 = vadd.f32 %v65, %v479
    %483 = vst [vmem:[#allocation2] sm:$0xff] %v482
    // Predicated region
    $region38: #{tpu_custom_call.1} parent=1 // pred_check
      %p484 = pneg %p60
    $region39: #{tpu_custom_call.1} parent=1 // pred_check_branch
      %486 = sbr.rel (%p484) target = $region41
    $region40: #{tpu_custom_call.1} parent=1 // pred_region
      %v487 = vld [vmem:[#allocation2] sm:$0xff]
      %v488 = vld [vmem:[%s2] sm:$0x1]
      %v490 = vlaneseq
      %v491 = vshrl.u32 %v490, 7
      %v492 = vsub.s32 0, %v491
      %v493 = vrot.slane %v488, %v492
      %v495 = vadd.f32 %v487, %v493
      %v496 = vtanh.pop %v495
      %v497 = vld [vmem:[#allocation8] sm:$0xff]
      %v498 = vld [vmem:[#allocation8 + $0x8] sm:$0xff]
      %v499 = vld [vmem:[#allocation8 + $0x10] sm:$0xff]
      %v500 = vld [vmem:[#allocation8 + $0x18] sm:$0xff]
      %v501 = vld [vmem:[#allocation8 + $0x20] sm:$0xff]
      %v502 = vld [vmem:[#allocation8 + $0x28] sm:$0xff]
      %v503 = vld [vmem:[#allocation8 + $0x30] sm:$0xff]
      %v504 = vld [vmem:[#allocation8 + $0x38] sm:$0xff]
      %v505 = vld [vmem:[#allocation8 + $0x40] sm:$0xff]
      %v506 = vld [vmem:[#allocation8 + $0x48] sm:$0xff]
      %v507 = vld [vmem:[#allocation8 + $0x50] sm:$0xff]
      %v508 = vld [vmem:[#allocation8 + $0x58] sm:$0xff]
      %v509 = vld [vmem:[#allocation8 + $0x60] sm:$0xff]
      %v510 = vld [vmem:[#allocation8 + $0x68] sm:$0xff]
      %v511 = vld [vmem:[#allocation8 + $0x70] sm:$0xff]
      %v512 = vld [vmem:[#allocation8 + $0x78] sm:$0xff]
      %v513 = vld [vmem:[%s4] sm:$0x1]
      %v515 = vlaneseq
      %v516 = vshrl.u32 %v515, 7
      %v517 = vsub.s32 0, %v516
      %v518 = vrot.slane %v513, %v517
      %520 = vmatprep.subr.mxu0 0.0
      %521 = vmatpush1.msra.mxu0 %v512
      %522 = vmatprep.subr.mxu0 0.0
      %523 = vmatpush1.msra.mxu0 %v511
      %524 = vmatprep.subr.mxu0 0.0
      %525 = vmatpush1.msra.mxu0 %v510
      %526 = vmatprep.subr.mxu0 0.0
      %527 = vmatpush1.msra.mxu0 %v509
      %528 = vmatprep.subr.mxu0 0.0
      %529 = vmatpush1.msra.mxu0 %v508
      %530 = vmatprep.subr.mxu0 0.0
      %531 = vmatpush1.msra.mxu0 %v507
      %532 = vmatprep.subr.mxu0 0.0
      %533 = vmatpush1.msra.mxu0 %v506
      %534 = vmatprep.subr.mxu0 0.0
      %535 = vmatpush1.msra.mxu0 %v505
      %536 = vmatprep.subr.mxu0 0.0
      %537 = vmatpush1.msra.mxu0 %v504
      %538 = vmatprep.subr.mxu0 0.0
      %539 = vmatpush1.msra.mxu0 %v503
      %540 = vmatprep.subr.mxu0 0.0
      %541 = vmatpush1.msra.mxu0 %v502
      %542 = vmatprep.subr.mxu0 0.0
      %543 = vmatpush1.msra.mxu0 %v501
      %544 = vmatprep.subr.mxu0 0.0
      %545 = vmatpush1.msra.mxu0 %v500
      %546 = vmatprep.subr.mxu0 0.0
      %547 = vmatpush1.msra.mxu0 %v499
      %548 = vmatprep.subr.mxu0 0.0
      %549 = vmatpush1.msra.mxu0 %v498
      %550 = vmatprep.subr.mxu0 0.0
      %551 = vmatpush1.msra.mxu0 %v497
      %552 = vmatprep.subr.mxu0 0.0
      %553 = vmatpush2.msra.mxu0 0.0
      %554 = vmatprep.subr.mxu0 0.0
      %555 = vmatpush2.msra.mxu0 0.0
      %556 = vmatprep.subr.mxu0 0.0
      %557 = vmatpush2.msra.mxu0 0.0
      %558 = vmatprep.subr.mxu0 0.0
      %559 = vmatpush2.msra.mxu0 0.0
      %560 = vmatprep.subr.mxu0 0.0
      %561 = vmatpush2.msra.mxu0 0.0
      %562 = vmatprep.subr.mxu0 0.0
      %563 = vmatpush2.msra.mxu0 0.0
      %564 = vmatprep.subr.mxu0 0.0
      %565 = vmatpush2.msra.mxu0 0.0
      %566 = vmatprep.subr.mxu0 0.0
      %567 = vmatpush2.msra.mxu0 0.0
      %568 = vmatprep.subr.mxu0 0.0
      %569 = vmatpush2.msra.mxu0 0.0
      %570 = vmatprep.subr.mxu0 0.0
      %571 = vmatpush2.msra.mxu0 0.0
      %572 = vmatprep.subr.mxu0 0.0
      %573 = vmatpush2.msra.mxu0 0.0
      %574 = vmatprep.subr.mxu0 0.0
      %575 = vmatpush2.msra.mxu0 0.0
      %576 = vmatprep.subr.mxu0 0.0
      %577 = vmatpush2.msra.mxu0 0.0
      %578 = vmatprep.subr.mxu0 0.0
      %579 = vmatpush2.msra.mxu0 0.0
      %580 = vmatprep.subr.mxu0 0.0
      %581 = vmatpush2.msra.mxu0 0.0
      %582 = vmatprep.subr.mxu0 0.0
      %583 = vmatpush2.msra.mxu0 0.0
      %584 = vmatprep.mubr.f32.mxu0 0.0
      %585 = vmatmul.mubr.f32.gmra.mxu0 %v496
      %v586 = vpop.f32.mrf.mxu0
      %v587 = vadd.f32 %v518, %v586
      %v588 = vpop.f32.mrf.mxu0
      %589 = vdwg.mxu0
      %v590 = vxor.u32 %v587, 2147483648
      %v591 = vmul.f32 %v590, 1.442695
      %v592 = vpow.pop %v591
      %v593 = vadd.f32 %v592, 1.0
      %v594 = vrcp.pop %v593
      %v595 = vmul.f32 1.0, %v594
      %596 = vst [vmem:[#allocation9] sm:$0xff] %v595
    $region41: #{tpu_custom_call.1} parent=1 // pred_fallthru
      _
    // Predicated region
    $region42: #{tpu_custom_call.1} parent=1 // pred_check
      _
    $region43: #{tpu_custom_call.1} parent=1 // pred_check_branch
      %598 = sbr.rel (0) target = $region45
    $region44: #{tpu_custom_call.1} parent=1 // pred_region
      %s600 = ssub.s32 128, 128
      %601 = vsyncadd [#allocation5], %s600
      %s603 = sshll.u32 [#allocation9], 4
      %s604 = int_to_ptr.vmem [resolvable:$true] %s603
      %606 = dma.vmem_to_hbm [thread:$0]  %s604, 128, %s5, [#allocation5]
    $region45: #{tpu_custom_call.1} parent=1 // pred_fallthru
      _
    // Predicated region
    $region46: #{tpu_custom_call.1} parent=1 // pred_check
      _
    $region47: #{tpu_custom_call.1} parent=1 // pred_check_branch
      %608 = sbr.rel (0) target = $region49
    $region48: #{tpu_custom_call.1} parent=1 // pred_region
      %609 = dma.done [#allocation5], 128
    $region49: #{tpu_custom_call.1} parent=1 // pred_fallthru
      _
    %610 = vsyncpa [#allocation4], 1
    %611 = vsyncpa [#allocation7], 1
    %612 = vsyncpa [#allocation5], 1

</llo_original>
